<compile_context>
chip_gen: v5e
topology: v5e:2x2
jax: 0.10.0
libtpu: 0.0.40
codegen_flags: <defaults>
</compile_context>

<pallas_src>
import functools

import jax
import jax.numpy as jnp
from jax import lax
from jax.experimental import pallas as pl
from jax.experimental.pallas import tpu as pltpu


_CP = 128   # lane-padded channel width for every conv layer / FC
_K1 = 8     # padded (tap * Cin) width for the layer-1 im2col matmul


def _round_up(x, m):
    return ((x + m - 1) // m) * m


def _pick_bt(B, Lp, vmem_budget=20 << 20):
    """Largest batch tile whose per-step activations fit a conservative budget
    (sized for v7x's 64 MiB VMEM with double-buffered input tiles)."""
    cap = min(128, _round_up(B, 8))
    for cand in (128, 64, 32, 16, 8):
        if cand <= cap and cand * Lp * _CP * 16 <= vmem_budget:
            return cand
    return 8


def _generic_net_kernel(x_ref,
                        w1_ref, s1_ref, t1_ref,
                        w2_ref, s2_ref, t2_ref,
                        w3_ref, s3_ref, t3_ref,
                        wfc_ref, bfc_ref,
                        out_ref,
                        *, L, Lp):
    """One batch tile: x_ref (Bt, Lp, 8) bf16 (im2col'd input) -> out_ref (Bt, 128)."""
    dnum = (((2,), (0,)), ((), ()))
    # L-tail validity mask; broadcasts against (Bt, Lp, 128) activations.
    valid = lax.broadcasted_iota(jnp.int32, (Lp, 1), 0) < L

    # ---- layer 1: Conv1d(1->64, k=3, pad=1) + folded BN + ReLU as one K=8 matmul.
    acc = lax.dot_general(x_ref[...], w1_ref[...], dnum,
                          preferred_element_type=jnp.float32)        # (Bt, Lp, 128)
    h = jnp.maximum(acc * s1_ref[...] + t1_ref[...], 0.0)
    h = jnp.where(valid, h, 0.0)                                      # zero the L tail

    # ---- layers 2 & 3: three K=128 bf16 matmuls (one per conv tap) on the same
    # operand; the +/-1 L-shift is applied to the f32 partial sums with an XLU
    # roll.  Because Lp > L and the tail is re-zeroed every layer, the circular
    # wrap rows are either zero or land in the masked tail, so padding=1 comes
    # for free (no boundary selects).
    def conv_bn_relu(h_f32, w_ref, s_ref, t_ref):
        hb = h_f32.astype(jnp.bfloat16)
        d0 = lax.dot_general(hb, w_ref[0], dnum, preferred_element_type=jnp.float32)
        d1 = lax.dot_general(hb, w_ref[1], dnum, preferred_element_type=jnp.float32)
        d2 = lax.dot_general(hb, w_ref[2], dnum, preferred_element_type=jnp.float32)
        acc = d1 + pltpu.roll(d0, 1, axis=1) + pltpu.roll(d2, Lp - 1, axis=1)
        y = jnp.maximum(acc * s_ref[...] + t_ref[...], 0.0)
        return jnp.where(valid, y, 0.0)

    h = conv_bn_relu(h, w2_ref, s2_ref, t2_ref)
    h = conv_bn_relu(h, w3_ref, s3_ref, t3_ref)

    # ---- AdaptiveAvgPool1d(1) + Flatten + Linear (lane-dense padded 128 -> 128).
    pooled = jnp.sum(h, axis=1) * (1.0 / L)                           # (Bt, 128)
    out = jnp.dot(pooled, wfc_ref[...],
                  preferred_element_type=jnp.float32) + bfc_ref[...]
    out_ref[...] = out.astype(out_ref.dtype)


def generic_net_forward(x_ncl, params, output_size, *, bt=None):
    """x_ncl: (B, 1, L) float32 — the layout PyTorch's Conv1d receives."""
    B, cin, L = x_ncl.shape
    assert cin == 1
    (w1, s1, t1, w2, s2, t2, w3, s3, t3, wfc, bfc) = params
    out_pad = wfc.shape[-1]

    # L padded to a multiple of 8 and strictly > L (so roll wraps hit the zeroed
    # tail); B padded to the chosen batch tile.
    Lp = _round_up(L + 1, 8)
    if bt is None:
        bt = _pick_bt(B, Lp)
    Bp = _round_up(B, bt)

    # Layer-1 im2col in the wrapper (pure layout plumbing on the tiny (B, L)
    # input): channel axis holds [x[l-1], x[l], x[l+1], 0, ..., 0].
    x = x_ncl[:, 0, :]
    xm = jnp.pad(x, ((0, 0), (1, 0)))[:, :L]
    xp = jnp.pad(x, ((0, 0), (0, 1)))[:, 1:]
    xcat = jnp.stack([xm, x, xp], axis=-1)                            # (B, L, 3)
    xcat = jnp.pad(xcat, ((0, Bp - B), (0, Lp - L), (0, _K1 - 3)))
    xcat = xcat.astype(jnp.bfloat16)

    # bf16 operands for the MXU matmuls (accumulation stays f32 in-kernel).
    w1b = w1.astype(jnp.bfloat16)
    w2b = w2.astype(jnp.bfloat16)
    w3b = w3.astype(jnp.bfloat16)

    def _const(arr):
        nd = arr.ndim
        return pl.BlockSpec(arr.shape, lambda i, nd=nd: (0,) * nd)

    flops = int(2 * Bp * Lp * _CP * (_K1 + 6 * _CP) + 2 * Bp * _CP * out_pad)
    bytes_accessed = int(xcat.size * 2 + Bp * out_pad * 4
                         + sum(int(p.size) * p.dtype.itemsize
                               for p in (w1b, s1, t1, w2b, s2, t2, w3b, s3, t3,
                                         wfc, bfc)))

    out = pl.pallas_call(
        functools.partial(_generic_net_kernel, L=L, Lp=Lp),
        out_shape=jax.ShapeDtypeStruct((Bp, out_pad), jnp.float32),
        grid=(Bp // bt,),
        in_specs=[
            pl.BlockSpec((bt, Lp, _K1), lambda i: (i, 0, 0)),         # x batch tile
            _const(w1b), _const(s1), _const(t1),
            _const(w2b), _const(s2), _const(t2),
            _const(w3b), _const(s3), _const(t3),
            _const(wfc), _const(bfc),
        ],
        out_specs=pl.BlockSpec((bt, out_pad), lambda i: (i, 0)),
        compiler_params=pltpu.CompilerParams(
            dimension_semantics=("parallel",),     # shards batch over v7x's 2 TCs
            vmem_limit_bytes=48 * 1024 * 1024),
        cost_estimate=pl.CostEstimate(flops=flops, transcendentals=0,
                                      bytes_accessed=bytes_accessed),
    )(xcat, w1b, s1, t1, w2b, s2, t2, w3b, s3, t3, wfc, bfc)
    return out[:B, :output_size]


def make_params(key, output_size):
    """Deterministic init.  BatchNorm (inference, running stats) + conv bias are
    folded into per-channel (scale, shift).  Channel axes are zero-padded to 128
    so padded lanes compute exactly 0 after the affine + ReLU."""
    eps = 1e-5

    def bn_fold(k, cout):
        kk = jax.random.split(k, 5)
        conv_b = jax.random.normal(kk[0], (cout,), jnp.float32) * 0.1
        gamma = 1.0 + 0.1 * jax.random.normal(kk[1], (cout,), jnp.float32)
        beta = 0.1 * jax.random.normal(kk[2], (cout,), jnp.float32)
        r_mean = 0.1 * jax.random.normal(kk[3], (cout,), jnp.float32)
        r_var = jnp.abs(jax.random.normal(kk[4], (cout,), jnp.float32)) + 0.5
        scale = gamma / jnp.sqrt(r_var + eps)
        shift = beta + (conv_b - r_mean) * scale
        scale = jnp.pad(scale, (0, _CP - cout)).reshape(1, _CP)
        shift = jnp.pad(shift, (0, _CP - cout)).reshape(1, _CP)
        return scale, shift

    keys = jax.random.split(key, 8)

    # layer 1: Conv1d(1 -> 64, k=3).  Packed as (8, 128): row k = tap k
    # (k=0 -> x[l-1], 1 -> x[l], 2 -> x[l+1]); rows 3..7 and cols 64..127 zero.
    w1 = jax.random.normal(keys[0], (3, 64), jnp.float32) * 0.1
    w1 = jnp.pad(w1, ((0, _K1 - 3), (0, _CP - 64)))
    s1, t1 = bn_fold(keys[1], 64)

    # layer 2: Conv1d(64 -> 128, k=3).  Packed as (3, Cin_pad=128, Cout=128).
    w2 = jax.random.normal(keys[2], (3, 64, 128), jnp.float32) * 0.1
    w2 = jnp.pad(w2, ((0, 0), (0, _CP - 64), (0, 0)))
    s2, t2 = bn_fold(keys[3], 128)

    # layer 3: Conv1d(128 -> 64, k=3).  Packed as (3, 128, Cout_pad=128).
    w3 = jax.random.normal(keys[4], (3, 128, 64), jnp.float32) * 0.1
    w3 = jnp.pad(w3, ((0, 0), (0, 0), (0, _CP - 64)))
    s3, t3 = bn_fold(keys[5], 64)

    # FC: Linear(64 -> output_size), padded to a lane-dense (128, 128) slab.
    out_pad = _round_up(output_size, _CP)
    wfc = jax.random.normal(keys[6], (64, output_size), jnp.float32) * 0.1
    wfc = jnp.pad(wfc, ((0, _CP - 64), (0, out_pad - output_size)))
    bfc = jax.random.normal(keys[7], (output_size,), jnp.float32) * 0.1
    bfc = jnp.pad(bfc, (0, out_pad - output_size)).reshape(1, out_pad)

    return (w1, s1, t1, w2, s2, t2, w3, s3, t3, wfc, bfc)


if __name__ == "__main__":
    key = jax.random.PRNGKey(0)
    k_x, k_p = jax.random.split(key)

    B, L, OUT = 2, 16, 8
    # PyTorch-style input: (batch, 1, length), as produced by .unsqueeze(1)
    x = jax.random.normal(k_x, (B, 1, L), jnp.float32)
    params = make_params(k_p, OUT)

    out = generic_net_forward(x, params, OUT)
    out = jax.block_until_ready(out)

    assert out.shape == (B, OUT)
    assert bool(jnp.all(jnp.isfinite(out)))
    print("KERNEL_OK")
</pallas_src>

<mosaic_0001>
module attributes {stable_mosaic.version = 11 : i64} {
  func.func @_generic_net_kernel(%arg0: i32, %arg1: memref<8x24x8xbf16, #tpu.memory_space<vmem>>, %arg2: memref<8x128xbf16, #tpu.memory_space<vmem>>, %arg3: memref<1x128xf32, #tpu.memory_space<vmem>>, %arg4: memref<1x128xf32, #tpu.memory_space<vmem>>, %arg5: memref<3x128x128xbf16, #tpu.memory_space<vmem>>, %arg6: memref<1x128xf32, #tpu.memory_space<vmem>>, %arg7: memref<1x128xf32, #tpu.memory_space<vmem>>, %arg8: memref<3x128x128xbf16, #tpu.memory_space<vmem>>, %arg9: memref<1x128xf32, #tpu.memory_space<vmem>>, %arg10: memref<1x128xf32, #tpu.memory_space<vmem>>, %arg11: memref<128x128xf32, #tpu.memory_space<vmem>>, %arg12: memref<1x128xf32, #tpu.memory_space<vmem>>, %arg13: memref<8x128xf32, #tpu.memory_space<vmem>>) attributes {dimension_semantics = [#tpu.dimension_semantics<parallel>], iteration_bounds = array<i64: 1>, scalar_prefetch = 0 : i64, scratch_operands = 0 : i64, tpu.core_type = #tpu.core_type<tc>, window_params = [{transform_indices = @transform_0, window_bounds = array<i64: 8, 24, 8>}, {pipeline_mode = #tpu.pipeline_mode<synchronous>, transform_indices = @transform_1, window_bounds = array<i64: 8, 128>}, {pipeline_mode = #tpu.pipeline_mode<synchronous>, transform_indices = @transform_2, window_bounds = array<i64: 1, 128>}, {pipeline_mode = #tpu.pipeline_mode<synchronous>, transform_indices = @transform_3, window_bounds = array<i64: 1, 128>}, {pipeline_mode = #tpu.pipeline_mode<synchronous>, transform_indices = @transform_4, window_bounds = array<i64: 3, 128, 128>}, {pipeline_mode = #tpu.pipeline_mode<synchronous>, transform_indices = @transform_5, window_bounds = array<i64: 1, 128>}, {pipeline_mode = #tpu.pipeline_mode<synchronous>, transform_indices = @transform_6, window_bounds = array<i64: 1, 128>}, {pipeline_mode = #tpu.pipeline_mode<synchronous>, transform_indices = @transform_7, window_bounds = array<i64: 3, 128, 128>}, {pipeline_mode = #tpu.pipeline_mode<synchronous>, transform_indices = @transform_8, window_bounds = array<i64: 1, 128>}, {pipeline_mode = #tpu.pipeline_mode<synchronous>, transform_indices = @transform_9, window_bounds = array<i64: 1, 128>}, {pipeline_mode = #tpu.pipeline_mode<synchronous>, transform_indices = @transform_10, window_bounds = array<i64: 128, 128>}, {pipeline_mode = #tpu.pipeline_mode<synchronous>, transform_indices = @transform_11, window_bounds = array<i64: 1, 128>}, {transform_indices = @transform_12, window_bounds = array<i64: 8, 128>}]} {
    %0 = tpu.iota {dimensions = array<i32: 0>} : vector<24x1xi32>
    %c16_i32 = arith.constant 16 : i32
    %1 = vector.broadcast %c16_i32 : i32 to vector<24x1xi32>
    %2 = arith.cmpi slt, %0, %1 : vector<24x1xi32>
    %c0 = arith.constant 0 : index
    %c0_0 = arith.constant 0 : index
    %c0_1 = arith.constant 0 : index
    %3 = vector.load %arg1[%c0, %c0_0, %c0_1] : memref<8x24x8xbf16, #tpu.memory_space<vmem>>, vector<8x24x8xbf16>
    %c0_2 = arith.constant 0 : index
    %c0_3 = arith.constant 0 : index
    %4 = vector.load %arg2[%c0_2, %c0_3] : memref<8x128xbf16, #tpu.memory_space<vmem>>, vector<8x128xbf16>
    %cst = arith.constant dense<0.000000e+00> : vector<8x24x128xf32>
    %5 = tpu.matmul %3, %4, %cst {dimension_numbers = #tpu.dot_dimension_numbers<[2], [0], [0, 1], [1], [0, 0, 0, 1, 1, 1], [], []>} : vector<8x24x8xbf16>, vector<8x128xbf16>, vector<8x24x128xf32> -> vector<8x24x128xf32>
    %c0_4 = arith.constant 0 : index
    %c0_5 = arith.constant 0 : index
    %6 = vector.load %arg3[%c0_4, %c0_5] : memref<1x128xf32, #tpu.memory_space<vmem>>, vector<1x128xf32>
    %7 = vector.shape_cast %6 : vector<1x128xf32> to vector<1x1x128xf32>
    %8 = vector.broadcast %7 : vector<1x1x128xf32> to vector<8x24x128xf32>
    %9 = arith.mulf %5, %8 : vector<8x24x128xf32>
    %c0_6 = arith.constant 0 : index
    %c0_7 = arith.constant 0 : index
    %10 = vector.load %arg4[%c0_6, %c0_7] : memref<1x128xf32, #tpu.memory_space<vmem>>, vector<1x128xf32>
    %11 = vector.shape_cast %10 : vector<1x128xf32> to vector<1x1x128xf32>
    %12 = vector.broadcast %11 : vector<1x1x128xf32> to vector<8x24x128xf32>
    %13 = arith.addf %9, %12 : vector<8x24x128xf32>
    %cst_8 = arith.constant 0.000000e+00 : f32
    %14 = vector.broadcast %cst_8 : f32 to vector<8x24x128xf32>
    %15 = arith.maximumf %13, %14 : vector<8x24x128xf32>
    %cst_9 = arith.constant 0.000000e+00 : f32
    %16 = vector.shape_cast %2 : vector<24x1xi1> to vector<1x24x1xi1>
    %17 = vector.broadcast %16 : vector<1x24x1xi1> to vector<8x24x128xi1>
    %18 = vector.broadcast %cst_9 : f32 to vector<8x24x128xf32>
    %19 = arith.select %17, %15, %18 : vector<8x24x128xi1>, vector<8x24x128xf32>
    %20 = arith.truncf %19 : vector<8x24x128xf32> to vector<8x24x128xbf16>
    %c0_10 = arith.constant 0 : index
    %c0_11 = arith.constant 0 : index
    %c0_12 = arith.constant 0 : index
    %21 = vector.load %arg5[%c0_10, %c0_11, %c0_12] : memref<3x128x128xbf16, #tpu.memory_space<vmem>>, vector<1x128x128xbf16>
    %22 = vector.shape_cast %21 : vector<1x128x128xbf16> to vector<128x128xbf16>
    %cst_13 = arith.constant dense<0.000000e+00> : vector<8x24x128xf32>
    %23 = tpu.matmul %20, %22, %cst_13 {dimension_numbers = #tpu.dot_dimension_numbers<[2], [0], [0, 1], [1], [0, 0, 0, 1, 1, 1], [], []>} : vector<8x24x128xbf16>, vector<128x128xbf16>, vector<8x24x128xf32> -> vector<8x24x128xf32>
    %c1 = arith.constant 1 : index
    %c0_14 = arith.constant 0 : index
    %c0_15 = arith.constant 0 : index
    %24 = vector.load %arg5[%c1, %c0_14, %c0_15] : memref<3x128x128xbf16, #tpu.memory_space<vmem>>, vector<1x128x128xbf16>
    %25 = vector.shape_cast %24 : vector<1x128x128xbf16> to vector<128x128xbf16>
    %cst_16 = arith.constant dense<0.000000e+00> : vector<8x24x128xf32>
    %26 = tpu.matmul %20, %25, %cst_16 {dimension_numbers = #tpu.dot_dimension_numbers<[2], [0], [0, 1], [1], [0, 0, 0, 1, 1, 1], [], []>} : vector<8x24x128xbf16>, vector<128x128xbf16>, vector<8x24x128xf32> -> vector<8x24x128xf32>
    %c2 = arith.constant 2 : index
    %c0_17 = arith.constant 0 : index
    %c0_18 = arith.constant 0 : index
    %27 = vector.load %arg5[%c2, %c0_17, %c0_18] : memref<3x128x128xbf16, #tpu.memory_space<vmem>>, vector<1x128x128xbf16>
    %28 = vector.shape_cast %27 : vector<1x128x128xbf16> to vector<128x128xbf16>
    %cst_19 = arith.constant dense<0.000000e+00> : vector<8x24x128xf32>
    %29 = tpu.matmul %20, %28, %cst_19 {dimension_numbers = #tpu.dot_dimension_numbers<[2], [0], [0, 1], [1], [0, 0, 0, 1, 1, 1], [], []>} : vector<8x24x128xbf16>, vector<128x128xbf16>, vector<8x24x128xf32> -> vector<8x24x128xf32>
    %c1_i32 = arith.constant 1 : i32
    %30 = tpu.dynamic_rotate %23 by %c1_i32 dim 1 : vector<8x24x128xf32>, i32 -> vector<8x24x128xf32>
    %31 = arith.addf %26, %30 : vector<8x24x128xf32>
    %c23_i32 = arith.constant 23 : i32
    %32 = tpu.dynamic_rotate %29 by %c23_i32 dim 1 : vector<8x24x128xf32>, i32 -> vector<8x24x128xf32>
    %33 = arith.addf %31, %32 : vector<8x24x128xf32>
    %c0_20 = arith.constant 0 : index
    %c0_21 = arith.constant 0 : index
    %34 = vector.load %arg6[%c0_20, %c0_21] : memref<1x128xf32, #tpu.memory_space<vmem>>, vector<1x128xf32>
    %35 = vector.shape_cast %34 : vector<1x128xf32> to vector<1x1x128xf32>
    %36 = vector.broadcast %35 : vector<1x1x128xf32> to vector<8x24x128xf32>
    %37 = arith.mulf %33, %36 : vector<8x24x128xf32>
    %c0_22 = arith.constant 0 : index
    %c0_23 = arith.constant 0 : index
    %38 = vector.load %arg7[%c0_22, %c0_23] : memref<1x128xf32, #tpu.memory_space<vmem>>, vector<1x128xf32>
    %39 = vector.shape_cast %38 : vector<1x128xf32> to vector<1x1x128xf32>
    %40 = vector.broadcast %39 : vector<1x1x128xf32> to vector<8x24x128xf32>
    %41 = arith.addf %37, %40 : vector<8x24x128xf32>
    %cst_24 = arith.constant 0.000000e+00 : f32
    %42 = vector.broadcast %cst_24 : f32 to vector<8x24x128xf32>
    %43 = arith.maximumf %41, %42 : vector<8x24x128xf32>
    %cst_25 = arith.constant 0.000000e+00 : f32
    %44 = vector.shape_cast %2 : vector<24x1xi1> to vector<1x24x1xi1>
    %45 = vector.broadcast %44 : vector<1x24x1xi1> to vector<8x24x128xi1>
    %46 = vector.broadcast %cst_25 : f32 to vector<8x24x128xf32>
    %47 = arith.select %45, %43, %46 : vector<8x24x128xi1>, vector<8x24x128xf32>
    %48 = arith.truncf %47 : vector<8x24x128xf32> to vector<8x24x128xbf16>
    %c0_26 = arith.constant 0 : index
    %c0_27 = arith.constant 0 : index
    %c0_28 = arith.constant 0 : index
    %49 = vector.load %arg8[%c0_26, %c0_27, %c0_28] : memref<3x128x128xbf16, #tpu.memory_space<vmem>>, vector<1x128x128xbf16>
    %50 = vector.shape_cast %49 : vector<1x128x128xbf16> to vector<128x128xbf16>
    %cst_29 = arith.constant dense<0.000000e+00> : vector<8x24x128xf32>
    %51 = tpu.matmul %48, %50, %cst_29 {dimension_numbers = #tpu.dot_dimension_numbers<[2], [0], [0, 1], [1], [0, 0, 0, 1, 1, 1], [], []>} : vector<8x24x128xbf16>, vector<128x128xbf16>, vector<8x24x128xf32> -> vector<8x24x128xf32>
    %c1_30 = arith.constant 1 : index
    %c0_31 = arith.constant 0 : index
    %c0_32 = arith.constant 0 : index
    %52 = vector.load %arg8[%c1_30, %c0_31, %c0_32] : memref<3x128x128xbf16, #tpu.memory_space<vmem>>, vector<1x128x128xbf16>
    %53 = vector.shape_cast %52 : vector<1x128x128xbf16> to vector<128x128xbf16>
    %cst_33 = arith.constant dense<0.000000e+00> : vector<8x24x128xf32>
    %54 = tpu.matmul %48, %53, %cst_33 {dimension_numbers = #tpu.dot_dimension_numbers<[2], [0], [0, 1], [1], [0, 0, 0, 1, 1, 1], [], []>} : vector<8x24x128xbf16>, vector<128x128xbf16>, vector<8x24x128xf32> -> vector<8x24x128xf32>
    %c2_34 = arith.constant 2 : index
    %c0_35 = arith.constant 0 : index
    %c0_36 = arith.constant 0 : index
    %55 = vector.load %arg8[%c2_34, %c0_35, %c0_36] : memref<3x128x128xbf16, #tpu.memory_space<vmem>>, vector<1x128x128xbf16>
    %56 = vector.shape_cast %55 : vector<1x128x128xbf16> to vector<128x128xbf16>
    %cst_37 = arith.constant dense<0.000000e+00> : vector<8x24x128xf32>
    %57 = tpu.matmul %48, %56, %cst_37 {dimension_numbers = #tpu.dot_dimension_numbers<[2], [0], [0, 1], [1], [0, 0, 0, 1, 1, 1], [], []>} : vector<8x24x128xbf16>, vector<128x128xbf16>, vector<8x24x128xf32> -> vector<8x24x128xf32>
    %c1_i32_38 = arith.constant 1 : i32
    %58 = tpu.dynamic_rotate %51 by %c1_i32_38 dim 1 : vector<8x24x128xf32>, i32 -> vector<8x24x128xf32>
    %59 = arith.addf %54, %58 : vector<8x24x128xf32>
    %c23_i32_39 = arith.constant 23 : i32
    %60 = tpu.dynamic_rotate %57 by %c23_i32_39 dim 1 : vector<8x24x128xf32>, i32 -> vector<8x24x128xf32>
    %61 = arith.addf %59, %60 : vector<8x24x128xf32>
    %c0_40 = arith.constant 0 : index
    %c0_41 = arith.constant 0 : index
    %62 = vector.load %arg9[%c0_40, %c0_41] : memref<1x128xf32, #tpu.memory_space<vmem>>, vector<1x128xf32>
    %63 = vector.shape_cast %62 : vector<1x128xf32> to vector<1x1x128xf32>
    %64 = vector.broadcast %63 : vector<1x1x128xf32> to vector<8x24x128xf32>
    %65 = arith.mulf %61, %64 : vector<8x24x128xf32>
    %c0_42 = arith.constant 0 : index
    %c0_43 = arith.constant 0 : index
    %66 = vector.load %arg10[%c0_42, %c0_43] : memref<1x128xf32, #tpu.memory_space<vmem>>, vector<1x128xf32>
    %67 = vector.shape_cast %66 : vector<1x128xf32> to vector<1x1x128xf32>
    %68 = vector.broadcast %67 : vector<1x1x128xf32> to vector<8x24x128xf32>
    %69 = arith.addf %65, %68 : vector<8x24x128xf32>
    %cst_44 = arith.constant 0.000000e+00 : f32
    %70 = vector.broadcast %cst_44 : f32 to vector<8x24x128xf32>
    %71 = arith.maximumf %69, %70 : vector<8x24x128xf32>
    %cst_45 = arith.constant 0.000000e+00 : f32
    %72 = vector.shape_cast %2 : vector<24x1xi1> to vector<1x24x1xi1>
    %73 = vector.broadcast %72 : vector<1x24x1xi1> to vector<8x24x128xi1>
    %74 = vector.broadcast %cst_45 : f32 to vector<8x24x128xf32>
    %75 = arith.select %73, %71, %74 : vector<8x24x128xi1>, vector<8x24x128xf32>
    %cst_46 = arith.constant dense<0.000000e+00> : vector<8x128xf32>
    %76 = vector.multi_reduction <add>, %75, %cst_46 [1] : vector<8x24x128xf32> to vector<8x128xf32>
    %cst_47 = arith.constant 6.250000e-02 : f32
    %77 = vector.broadcast %cst_47 : f32 to vector<8x128xf32>
    %78 = arith.mulf %76, %77 : vector<8x128xf32>
    %c0_48 = arith.constant 0 : index
    %c0_49 = arith.constant 0 : index
    %79 = vector.load %arg11[%c0_48, %c0_49] : memref<128x128xf32, #tpu.memory_space<vmem>>, vector<128x128xf32>
    %cst_50 = arith.constant dense<0.000000e+00> : vector<8x128xf32>
    %80 = tpu.matmul %78, %79, %cst_50 {dimension_numbers = #tpu.dot_dimension_numbers<[1], [0], [0], [1], [0, 0, 1, 1], [], []>} : vector<8x128xf32>, vector<128x128xf32>, vector<8x128xf32> -> vector<8x128xf32>
    %c0_51 = arith.constant 0 : index
    %c0_52 = arith.constant 0 : index
    %81 = vector.load %arg12[%c0_51, %c0_52] : memref<1x128xf32, #tpu.memory_space<vmem>>, vector<1x128xf32>
    %82 = vector.broadcast %81 : vector<1x128xf32> to vector<8x128xf32>
    %83 = arith.addf %80, %82 : vector<8x128xf32>
    %c0_53 = arith.constant 0 : index
    %c0_54 = arith.constant 0 : index
    %84 = vector.load %arg13[%c0_53, %c0_54] : memref<8x128xf32, #tpu.memory_space<vmem>>, vector<8x128xf32>
    tpu.vector_store %arg13[%c0_53, %c0_54], %83 {strides = array<i32>} : memref<8x128xf32, #tpu.memory_space<vmem>>, vector<8x128xf32>,
    return
  }
  func.func @transform_0(%arg0: i32) -> (i32, i32, i32) {
    %c0_i32 = arith.constant 0 : i32
    %c0_i32_0 = arith.constant 0 : i32
    %c0_i32_1 = arith.constant 0 : i32
    return %arg0, %c0_i32, %c0_i32_0 : i32, i32, i32
  }
  func.func @transform_1(%arg0: i32) -> (i32, i32) {
    %c0_i32 = arith.constant 0 : i32
    %c0_i32_0 = arith.constant 0 : i32
    %c0_i32_1 = arith.constant 0 : i32
    return %c0_i32, %c0_i32_0 : i32, i32
  }
  func.func @transform_2(%arg0: i32) -> (i32, i32) {
    %c0_i32 = arith.constant 0 : i32
    %c0_i32_0 = arith.constant 0 : i32
    %c0_i32_1 = arith.constant 0 : i32
    return %c0_i32, %c0_i32_0 : i32, i32
  }
  func.func @transform_3(%arg0: i32) -> (i32, i32) {
    %c0_i32 = arith.constant 0 : i32
    %c0_i32_0 = arith.constant 0 : i32
    %c0_i32_1 = arith.constant 0 : i32
    return %c0_i32, %c0_i32_0 : i32, i32
  }
  func.func @transform_4(%arg0: i32) -> (i32, i32, i32) {
    %c0_i32 = arith.constant 0 : i32
    %c0_i32_0 = arith.constant 0 : i32
    %c0_i32_1 = arith.constant 0 : i32
    %c0_i32_2 = arith.constant 0 : i32
    return %c0_i32, %c0_i32_0, %c0_i32_1 : i32, i32, i32
  }
  func.func @transform_5(%arg0: i32) -> (i32, i32) {
    %c0_i32 = arith.constant 0 : i32
    %c0_i32_0 = arith.constant 0 : i32
    %c0_i32_1 = arith.constant 0 : i32
    return %c0_i32, %c0_i32_0 : i32, i32
  }
  func.func @transform_6(%arg0: i32) -> (i32, i32) {
    %c0_i32 = arith.constant 0 : i32
    %c0_i32_0 = arith.constant 0 : i32
    %c0_i32_1 = arith.constant 0 : i32
    return %c0_i32, %c0_i32_0 : i32, i32
  }
  func.func @transform_7(%arg0: i32) -> (i32, i32, i32) {
    %c0_i32 = arith.constant 0 : i32
    %c0_i32_0 = arith.constant 0 : i32
    %c0_i32_1 = arith.constant 0 : i32
    %c0_i32_2 = arith.constant 0 : i32
    return %c0_i32, %c0_i32_0, %c0_i32_1 : i32, i32, i32
  }
  func.func @transform_8(%arg0: i32) -> (i32, i32) {
    %c0_i32 = arith.constant 0 : i32
    %c0_i32_0 = arith.constant 0 : i32
    %c0_i32_1 = arith.constant 0 : i32
    return %c0_i32, %c0_i32_0 : i32, i32
  }
  func.func @transform_9(%arg0: i32) -> (i32, i32) {
    %c0_i32 = arith.constant 0 : i32
    %c0_i32_0 = arith.constant 0 : i32
    %c0_i32_1 = arith.constant 0 : i32
    return %c0_i32, %c0_i32_0 : i32, i32
  }
  func.func @transform_10(%arg0: i32) -> (i32, i32) {
    %c0_i32 = arith.constant 0 : i32
    %c0_i32_0 = arith.constant 0 : i32
    %c0_i32_1 = arith.constant 0 : i32
    return %c0_i32, %c0_i32_0 : i32, i32
  }
  func.func @transform_11(%arg0: i32) -> (i32, i32) {
    %c0_i32 = arith.constant 0 : i32
    %c0_i32_0 = arith.constant 0 : i32
    %c0_i32_1 = arith.constant 0 : i32
    return %c0_i32, %c0_i32_0 : i32, i32
  }
  func.func @transform_12(%arg0: i32) -> (i32, i32) {
    %c0_i32 = arith.constant 0 : i32
    %c0_i32_0 = arith.constant 0 : i32
    return %arg0, %c0_i32 : i32, i32
  }
}

</mosaic_0001>

<llo_original>
// kernel: tpu_custom_call.1
$region0: #{tpu_custom_call.1}
  #allocation0 [shape = 'u32[]', space=smem, size = 0x4, offset = 0x4, fixed_abs, tag = 'smem constant byte address 0x4 - core index']
  #allocation1 [shape = 'u32[72,128]{1,0:T(1,128)}', space=vmem, size = 0x9000, scoped, tag = 'internal scratch']
  %s0 = inlined_call_operand.vmem [shape: bf16[8,24,8], index: 0, kind: input, shape index: {}]
  %s1 = inlined_call_operand.vmem [shape: bf16[8,128], index: 1, kind: input, shape index: {}]
  %s2 = inlined_call_operand.vmem [shape: f32[1,128], index: 2, kind: input, shape index: {}]
  %s3 = inlined_call_operand.vmem [shape: f32[1,128], index: 3, kind: input, shape index: {}]
  %s4 = inlined_call_operand.hbm [shape: bf16[3,128,128], index: 4, kind: input, shape index: {}]
  %s5 = inlined_call_operand.vmem [shape: f32[1,128], index: 5, kind: input, shape index: {}]
  %s6 = inlined_call_operand.vmem [shape: f32[1,128], index: 6, kind: input, shape index: {}]
  %s7 = inlined_call_operand.hbm [shape: bf16[3,128,128], index: 7, kind: input, shape index: {}]
  %s8 = inlined_call_operand.vmem [shape: f32[1,128], index: 8, kind: input, shape index: {}]
  %s9 = inlined_call_operand.hbm [shape: f32[1,128], index: 9, kind: input, shape index: {}]
  %s10 = inlined_call_operand.vmem [shape: f32[128,128], index: 10, kind: input, shape index: {}]
  %s11 = inlined_call_operand.hbm [shape: f32[1,128], index: 11, kind: input, shape index: {}]
  %s12 = inlined_call_operand.hbm [shape: f32[8,128], index: 12, kind: output, shape index: {}]
  %s13 = sld [smem:[#allocation0]]
  $region74: #{tpu_custom_call.1} parent=0
    _
  %s15 = ssub.s32 1, %s13
  %s16 = scalar_select 0, %s15, %s13
  $region1: #{tpu_custom_call.1} parent=0
    #allocation2 [shape = 'u8[98304]{0}', space=vmem, size = 0x18000, scoped, tag = 'input window, operand 4, single buffered']
    #allocation3 [shape = 's32[1]{0}', space=sflag, size = 0x4, scoped, tag = 'scoped memory for tpu_custom_call.1']
    #allocation4 [shape = 's32[1]{0}', space=sflag, size = 0x4, scoped, tag = 'scoped memory for tpu_custom_call.1']
    #allocation5 [shape = 'u8[98304]{0}', space=vmem, size = 0x18000, scoped, tag = 'input window, operand 7, single buffered']
    #allocation6 [shape = 's32[1]{0}', space=sflag, size = 0x4, scoped, tag = 'scoped memory for tpu_custom_call.1']
    #allocation7 [shape = 'u8[512]{0}', space=vmem, size = 0x400, scoped, tag = 'input window, operand 9, single buffered']
    #allocation8 [shape = 'u8[512]{0}', space=vmem, size = 0x400, scoped, tag = 'input window, operand 11, single buffered']
    #allocation9 [shape = 's32[1]{0}', space=sflag, size = 0x4, scoped, tag = 'scoped memory for tpu_custom_call.1']
    #allocation10 [shape = 'u8[4096]{0}', space=vmem, size = 0x1000, scoped, tag = 'output window, operand 0, single buffered']
    %17 = vsyncpa [#allocation3], 0
    %18 = vsyncpa [#allocation6], 0
    %19 = vsyncpa [#allocation9], 0
    %20 = vsyncpa [#allocation4], 0
    // Predicated region
    $region2: #{tpu_custom_call.1} parent=1 // pred_check
      _
    $region3: #{tpu_custom_call.1} parent=1 // pred_check_branch
      %22 = sbr.rel (0) target = $region5
    $region4: #{tpu_custom_call.1} parent=1 // pred_region
      _
    $region5: #{tpu_custom_call.1} parent=1 // pred_fallthru
      _
    // Predicated region
    $region6: #{tpu_custom_call.1} parent=1 // pred_check
      _
    $region7: #{tpu_custom_call.1} parent=1 // pred_check_branch
      %24 = sbr.rel (0) target = $region9
    $region8: #{tpu_custom_call.1} parent=1 // pred_region
      _
    $region9: #{tpu_custom_call.1} parent=1 // pred_fallthru
      _
    // Predicated region
    $region10: #{tpu_custom_call.1} parent=1 // pred_check
      _
    $region11: #{tpu_custom_call.1} parent=1 // pred_check_branch
      %26 = sbr.rel (0) target = $region13
    $region12: #{tpu_custom_call.1} parent=1 // pred_region
      _
    $region13: #{tpu_custom_call.1} parent=1 // pred_fallthru
      _
    // Predicated region
    $region14: #{tpu_custom_call.1} parent=1 // pred_check
      _
    $region15: #{tpu_custom_call.1} parent=1 // pred_check_branch
      %28 = sbr.rel (0) target = $region17
    $region16: #{tpu_custom_call.1} parent=1 // pred_region
      _
    $region17: #{tpu_custom_call.1} parent=1 // pred_fallthru
      _
    // Predicated region
    $region18: #{tpu_custom_call.1} parent=1 // pred_check
      _
    $region19: #{tpu_custom_call.1} parent=1 // pred_check_branch
      %30 = sbr.rel (0) target = $region21
    $region20: #{tpu_custom_call.1} parent=1 // pred_region
      %32 = vsyncadd [#allocation3], 0
      %s33 = sshll.u32 %s4, 4
      %s34 = int_to_ptr.hbm [resolvable:$true] %s33
      %s35 = sshll.u32 [#allocation2], 4
      %s36 = int_to_ptr.vmem [resolvable:$true] %s35
      %41 = dma.hbm_to_vmem [thread:$0]  %s34, 3072, %s36, [#allocation3], 64, 64, 4
    $region21: #{tpu_custom_call.1} parent=1 // pred_fallthru
      _
    // Predicated region
    $region22: #{tpu_custom_call.1} parent=1 // pred_check
      _
    $region23: #{tpu_custom_call.1} parent=1 // pred_check_branch
      %43 = sbr.rel (0) target = $region25
    $region24: #{tpu_custom_call.1} parent=1 // pred_region
      _
    $region25: #{tpu_custom_call.1} parent=1 // pred_fallthru
      _
    // Predicated region
    $region26: #{tpu_custom_call.1} parent=1 // pred_check
      _
    $region27: #{tpu_custom_call.1} parent=1 // pred_check_branch
      %45 = sbr.rel (0) target = $region29
    $region28: #{tpu_custom_call.1} parent=1 // pred_region
      _
    $region29: #{tpu_custom_call.1} parent=1 // pred_fallthru
      _
    // Predicated region
    $region30: #{tpu_custom_call.1} parent=1 // pred_check
      _
    $region31: #{tpu_custom_call.1} parent=1 // pred_check_branch
      %47 = sbr.rel (0) target = $region33
    $region32: #{tpu_custom_call.1} parent=1 // pred_region
      %49 = vsyncadd [#allocation6], 0
      %s50 = sshll.u32 %s7, 4
      %s51 = int_to_ptr.hbm [resolvable:$true] %s50
      %s52 = sshll.u32 [#allocation5], 4
      %s53 = int_to_ptr.vmem [resolvable:$true] %s52
      %58 = dma.hbm_to_vmem [thread:$0]  %s51, 3072, %s53, [#allocation6], 64, 64, 4
    $region33: #{tpu_custom_call.1} parent=1 // pred_fallthru
      _
    // Predicated region
    $region34: #{tpu_custom_call.1} parent=1 // pred_check
      _
    $region35: #{tpu_custom_call.1} parent=1 // pred_check_branch
      %60 = sbr.rel (0) target = $region37
    $region36: #{tpu_custom_call.1} parent=1 // pred_region
      _
    $region37: #{tpu_custom_call.1} parent=1 // pred_fallthru
      _
    // Predicated region
    $region38: #{tpu_custom_call.1} parent=1 // pred_check
      _
    $region39: #{tpu_custom_call.1} parent=1 // pred_check_branch
      %62 = sbr.rel (0) target = $region41
    $region40: #{tpu_custom_call.1} parent=1 // pred_region
      %64 = vsyncadd [#allocation6], 0
      %s66 = sshll.u32 %s9, 4
      %s67 = int_to_ptr.hbm [resolvable:$true] %s66
      %s68 = sshll.u32 [#allocation7], 4
      %s69 = int_to_ptr.vmem [resolvable:$true] %s68
      %71 = dma.hbm_to_vmem [thread:$0]  %s67, 16, %s69, [#allocation6]
    $region41: #{tpu_custom_call.1} parent=1 // pred_fallthru
      _
    // Predicated region
    $region42: #{tpu_custom_call.1} parent=1 // pred_check
      _
    $region43: #{tpu_custom_call.1} parent=1 // pred_check_branch
      %73 = sbr.rel (0) target = $region45
    $region44: #{tpu_custom_call.1} parent=1 // pred_region
      _
    $region45: #{tpu_custom_call.1} parent=1 // pred_fallthru
      _
    // Predicated region
    $region46: #{tpu_custom_call.1} parent=1 // pred_check
      _
    $region47: #{tpu_custom_call.1} parent=1 // pred_check_branch
      %75 = sbr.rel (0) target = $region49
    $region48: #{tpu_custom_call.1} parent=1 // pred_region
      %77 = vsyncadd [#allocation9], 0
      %s79 = sshll.u32 %s11, 4
      %s80 = int_to_ptr.hbm [resolvable:$true] %s79
      %s81 = sshll.u32 [#allocation8], 4
      %s82 = int_to_ptr.vmem [resolvable:$true] %s81
      %84 = dma.hbm_to_vmem [thread:$0]  %s80, 16, %s82, [#allocation9]
    $region49: #{tpu_custom_call.1} parent=1 // pred_fallthru
      _
    // Predicated region
    $region50: #{tpu_custom_call.1} parent=1 // pred_check
      _
    $region51: #{tpu_custom_call.1} parent=1 // pred_check_branch
      %86 = sbr.rel (0) target = $region53
    $region52: #{tpu_custom_call.1} parent=1 // pred_region
      %88 = dma.done [#allocation3], 3072
    $region53: #{tpu_custom_call.1} parent=1 // pred_fallthru
      _
    // Predicated region
    $region54: #{tpu_custom_call.1} parent=1 // pred_check
      _
    $region55: #{tpu_custom_call.1} parent=1 // pred_check_branch
      %90 = sbr.rel (0) target = $region57
    $region56: #{tpu_custom_call.1} parent=1 // pred_region
      %92 = dma.done [#allocation6], 3072
    $region57: #{tpu_custom_call.1} parent=1 // pred_fallthru
      _
    // Predicated region
    $region58: #{tpu_custom_call.1} parent=1 // pred_check
      _
    $region59: #{tpu_custom_call.1} parent=1 // pred_check_branch
      %94 = sbr.rel (0) target = $region61
    $region60: #{tpu_custom_call.1} parent=1 // pred_region
      %96 = dma.done [#allocation6], 16
    $region61: #{tpu_custom_call.1} parent=1 // pred_fallthru
      _
    // Predicated region
    $region62: #{tpu_custom_call.1} parent=1 // pred_check
      _
    $region63: #{tpu_custom_call.1} parent=1 // pred_check_branch
      %98 = sbr.rel (0) target = $region65
    $region64: #{tpu_custom_call.1} parent=1 // pred_region
      %100 = dma.done [#allocation9], 16
    $region65: #{tpu_custom_call.1} parent=1 // pred_fallthru
      _
    %v102 = vlaneseq
    %v103 = vshrl.u32 %v102, 7
    %v104 = vadd.s32 %v103, 8
    %v105 = vadd.s32 %v103, 16
    %vm106 = vcmp.lt.s32.totalorder %v103, 16
    %vm107 = vcmp.lt.s32.totalorder %v104, 16
    %vm108 = vcmp.lt.s32.totalorder %v105, 16
    %v109 = vld [vmem:[%s0] sm:$0xf]
    %v110 = vld [vmem:[%s0 + $0x4] sm:$0xf]
    %v111 = vld [vmem:[%s0 + $0x8] sm:$0xf]
    %v112 = vld [vmem:[%s0 + $0xc] sm:$0xf]
    %v113 = vld [vmem:[%s0 + $0x10] sm:$0xf]
    %v114 = vld [vmem:[%s0 + $0x14] sm:$0xf]
    %v115 = vld [vmem:[%s0 + $0x18] sm:$0xf]
    %v116 = vld [vmem:[%s0 + $0x1c] sm:$0xf]
    %v117 = vld [vmem:[%s0 + $0x20] sm:$0xf]
    %v118 = vld [vmem:[%s0 + $0x24] sm:$0xf]
    %v119 = vld [vmem:[%s0 + $0x28] sm:$0xf]
    %v120 = vld [vmem:[%s0 + $0x2c] sm:$0xf]
    %v121 = vld [vmem:[%s0 + $0x30] sm:$0xf]
    %v122 = vld [vmem:[%s0 + $0x34] sm:$0xf]
    %v123 = vld [vmem:[%s0 + $0x38] sm:$0xf]
    %v124 = vld [vmem:[%s0 + $0x3c] sm:$0xf]
    %v125 = vld [vmem:[%s0 + $0x40] sm:$0xf]
    %v126 = vld [vmem:[%s0 + $0x44] sm:$0xf]
    %v127 = vld [vmem:[%s0 + $0x48] sm:$0xf]
    %v128 = vld [vmem:[%s0 + $0x4c] sm:$0xf]
    %v129 = vld [vmem:[%s0 + $0x50] sm:$0xf]
    %v130 = vld [vmem:[%s0 + $0x54] sm:$0xf]
    %v131 = vld [vmem:[%s0 + $0x58] sm:$0xf]
    %v132 = vld [vmem:[%s0 + $0x5c] sm:$0xf]
    %v133 = vld [vmem:[%s1] sm:$0xf]
    %v158 = vunpack.c.l.b16 %v109
    %v159 = vunpack.c.l.b16 %v110
    %v160 = vunpack.c.l.b16 %v111
    %v161 = vunpack.c.l.b16 %v112
    %v162 = vunpack.c.l.b16 %v113
    %v163 = vunpack.c.l.b16 %v114
    %v164 = vunpack.c.l.b16 %v115
    %v165 = vunpack.c.l.b16 %v116
    %v166 = vunpack.c.l.b16 %v117
    %v167 = vunpack.c.l.b16 %v118
    %v168 = vunpack.c.l.b16 %v119
    %v169 = vunpack.c.l.b16 %v120
    %v170 = vunpack.c.l.b16 %v121
    %v171 = vunpack.c.l.b16 %v122
    %v172 = vunpack.c.l.b16 %v123
    %v173 = vunpack.c.l.b16 %v124
    %v174 = vunpack.c.l.b16 %v125
    %v175 = vunpack.c.l.b16 %v126
    %v176 = vunpack.c.l.b16 %v127
    %v177 = vunpack.c.l.b16 %v128
    %v178 = vunpack.c.l.b16 %v129
    %v179 = vunpack.c.l.b16 %v130
    %v180 = vunpack.c.l.b16 %v131
    %v181 = vunpack.c.l.b16 %v132
    %v182 = vpack.c.b16 %v159, %v158
    %v183 = vpack.c.b16 %v161, %v160
    %v184 = vpack.c.b16 %v163, %v162
    %v185 = vpack.c.b16 %v165, %v164
    %v186 = vpack.c.b16 %v167, %v166
    %v187 = vpack.c.b16 %v169, %v168
    %v188 = vpack.c.b16 %v171, %v170
    %v189 = vpack.c.b16 %v173, %v172
    %v190 = vpack.c.b16 %v175, %v174
    %v191 = vpack.c.b16 %v177, %v176
    %v192 = vpack.c.b16 %v179, %v178
    %v193 = vpack.c.b16 %v181, %v180
    %vm194 = vcmask 64512
    %v196 = vsel %vm194, %v182, 0
    %v199 = vsel %vm194, %v183, 0
    %v202 = vsel %vm194, %v184, 0
    %v205 = vsel %vm194, %v185, 0
    %v208 = vsel %vm194, %v186, 0
    %v211 = vsel %vm194, %v187, 0
    %v214 = vsel %vm194, %v188, 0
    %v217 = vsel %vm194, %v189, 0
    %v220 = vsel %vm194, %v190, 0
    %v223 = vsel %vm194, %v191, 0
    %v226 = vsel %vm194, %v192, 0
    %v229 = vsel %vm194, %v193, 0
    %vm231 = vcmask 1043456
    %v233 = vsel %vm231, %v133, 0
    %235 = vmatpush.bf16.msra.mxu0 0
    %236 = vmatpush.bf16.msra.mxu0 0
    %237 = vmatpush.bf16.msra.mxu0 0
    %238 = vmatpush.bf16.msra.mxu0 0
    %239 = vmatpush.bf16.msra.mxu0 0
    %240 = vmatpush.bf16.msra.mxu0 0
    %241 = vmatpush.bf16.msra.mxu0 0
    %242 = vmatpush.bf16.msra.mxu0 %v233
    %243 = vmatmul.bf16.gmra.mxu0 %v196
    %v244 = vpop.f32.mrf.mxu0
    %v245 = vadd.f32 0.0, %v244
    %v246 = vpop.f32.mrf.mxu0
    %v247 = vadd.f32 0.0, %v246
    %248 = vmatmul.bf16.gmra.mxu0 %v199
    %v249 = vpop.f32.mrf.mxu0
    %v250 = vadd.f32 0.0, %v249
    %v251 = vpop.f32.mrf.mxu0
    %v252 = vadd.f32 0.0, %v251
    %253 = vmatmul.bf16.gmra.mxu0 %v202
    %v254 = vpop.f32.mrf.mxu0
    %v255 = vadd.f32 0.0, %v254
    %v256 = vpop.f32.mrf.mxu0
    %v257 = vadd.f32 0.0, %v256
    %258 = vmatmul.bf16.gmra.mxu0 %v205
    %v259 = vpop.f32.mrf.mxu0
    %v260 = vadd.f32 0.0, %v259
    %v261 = vpop.f32.mrf.mxu0
    %v262 = vadd.f32 0.0, %v261
    %263 = vmatmul.bf16.gmra.mxu0 %v208
    %v264 = vpop.f32.mrf.mxu0
    %v265 = vadd.f32 0.0, %v264
    %v266 = vpop.f32.mrf.mxu0
    %v267 = vadd.f32 0.0, %v266
    %268 = vmatmul.bf16.gmra.mxu0 %v211
    %v269 = vpop.f32.mrf.mxu0
    %v270 = vadd.f32 0.0, %v269
    %v271 = vpop.f32.mrf.mxu0
    %v272 = vadd.f32 0.0, %v271
    %273 = vmatmul.bf16.gmra.mxu0 %v214
    %v274 = vpop.f32.mrf.mxu0
    %v275 = vadd.f32 0.0, %v274
    %v276 = vpop.f32.mrf.mxu0
    %v277 = vadd.f32 0.0, %v276
    %278 = vmatmul.bf16.gmra.mxu0 %v217
    %v279 = vpop.f32.mrf.mxu0
    %v280 = vadd.f32 0.0, %v279
    %v281 = vpop.f32.mrf.mxu0
    %v282 = vadd.f32 0.0, %v281
    %283 = vmatmul.bf16.gmra.mxu0 %v220
    %v284 = vpop.f32.mrf.mxu0
    %v285 = vadd.f32 0.0, %v284
    %v286 = vpop.f32.mrf.mxu0
    %v287 = vadd.f32 0.0, %v286
    %288 = vmatmul.bf16.gmra.mxu0 %v223
    %v289 = vpop.f32.mrf.mxu0
    %v290 = vadd.f32 0.0, %v289
    %v291 = vpop.f32.mrf.mxu0
    %v292 = vadd.f32 0.0, %v291
    %293 = vmatmul.bf16.gmra.mxu0 %v226
    %v294 = vpop.f32.mrf.mxu0
    %v295 = vadd.f32 0.0, %v294
    %v296 = vpop.f32.mrf.mxu0
    %v297 = vadd.f32 0.0, %v296
    %298 = vmatmul.bf16.gmra.mxu0 %v229
    %v299 = vpop.f32.mrf.mxu0
    %v300 = vadd.f32 0.0, %v299
    %v301 = vpop.f32.mrf.mxu0
    %v302 = vadd.f32 0.0, %v301
    %303 = vdwg.mxu0
    %v304 = vld [vmem:[%s2] sm:$0x1]
    %v306 = vperm.slane %v304, 0
    %v308 = vmul.f32 %v245, %v306
    %v309 = vmul.f32 %v247, %v306
    %v310 = vmul.f32 %v250, %v306
    %v311 = vmul.f32 %v252, %v306
    %v312 = vmul.f32 %v255, %v306
    %v313 = vmul.f32 %v257, %v306
    %v314 = vmul.f32 %v260, %v306
    %v315 = vmul.f32 %v262, %v306
    %v316 = vmul.f32 %v265, %v306
    %v317 = vmul.f32 %v267, %v306
    %v318 = vmul.f32 %v270, %v306
    %v319 = vmul.f32 %v272, %v306
    %v320 = vmul.f32 %v275, %v306
    %v321 = vmul.f32 %v277, %v306
    %v322 = vmul.f32 %v280, %v306
    %v323 = vmul.f32 %v282, %v306
    %v324 = vmul.f32 %v285, %v306
    %v325 = vmul.f32 %v287, %v306
    %v326 = vmul.f32 %v290, %v306
    %v327 = vmul.f32 %v292, %v306
    %v328 = vmul.f32 %v295, %v306
    %v329 = vmul.f32 %v297, %v306
    %v330 = vmul.f32 %v300, %v306
    %v331 = vmul.f32 %v302, %v306
    %v332 = vld [vmem:[%s3] sm:$0x1]
    %v334 = vperm.slane %v332, 0
    %v336 = vadd.f32 %v308, %v334
    %v337 = vadd.f32 %v309, %v334
    %v338 = vadd.f32 %v310, %v334
    %v339 = vadd.f32 %v311, %v334
    %v340 = vadd.f32 %v312, %v334
    %v341 = vadd.f32 %v313, %v334
    %v342 = vadd.f32 %v314, %v334
    %v343 = vadd.f32 %v315, %v334
    %v344 = vadd.f32 %v316, %v334
    %v345 = vadd.f32 %v317, %v334
    %v346 = vadd.f32 %v318, %v334
    %v347 = vadd.f32 %v319, %v334
    %v348 = vadd.f32 %v320, %v334
    %v349 = vadd.f32 %v321, %v334
    %v350 = vadd.f32 %v322, %v334
    %v351 = vadd.f32 %v323, %v334
    %v352 = vadd.f32 %v324, %v334
    %v353 = vadd.f32 %v325, %v334
    %v354 = vadd.f32 %v326, %v334
    %v355 = vadd.f32 %v327, %v334
    %v356 = vadd.f32 %v328, %v334
    %v357 = vadd.f32 %v329, %v334
    %v358 = vadd.f32 %v330, %v334
    %v359 = vadd.f32 %v331, %v334
    %v360 = vmax.f32 %v336, 0.0
    %v361 = vmax.f32 %v337, 0.0
    %v362 = vmax.f32 %v338, 0.0
    %v363 = vmax.f32 %v339, 0.0
    %v364 = vmax.f32 %v340, 0.0
    %v365 = vmax.f32 %v341, 0.0
    %v366 = vmax.f32 %v342, 0.0
    %v367 = vmax.f32 %v343, 0.0
    %v368 = vmax.f32 %v344, 0.0
    %v369 = vmax.f32 %v345, 0.0
    %v370 = vmax.f32 %v346, 0.0
    %v371 = vmax.f32 %v347, 0.0
    %v372 = vmax.f32 %v348, 0.0
    %v373 = vmax.f32 %v349, 0.0
    %v374 = vmax.f32 %v350, 0.0
    %v375 = vmax.f32 %v351, 0.0
    %v376 = vmax.f32 %v352, 0.0
    %v377 = vmax.f32 %v353, 0.0
    %v378 = vmax.f32 %v354, 0.0
    %v379 = vmax.f32 %v355, 0.0
    %v380 = vmax.f32 %v356, 0.0
    %v381 = vmax.f32 %v357, 0.0
    %v382 = vmax.f32 %v358, 0.0
    %v383 = vmax.f32 %v359, 0.0
    %v384 = vsel %vm106, 1, 0
    %v385 = vsel %vm107, 1, 0
    %v386 = vsel %vm108, 1, 0
    %vm387 = vcmp.eq.s32.totalorder %v384, 1
    %vm388 = vcmp.eq.s32.totalorder %v385, 1
    %vm389 = vcmp.eq.s32.totalorder %v386, 1
    %v390 = vsel %vm387, %v360, 0.0
    %v391 = vsel %vm388, %v361, 0.0
    %v392 = vsel %vm389, %v362, 0.0
    %v393 = vsel %vm387, %v363, 0.0
    %v394 = vsel %vm388, %v364, 0.0
    %v395 = vsel %vm389, %v365, 0.0
    %v396 = vsel %vm387, %v366, 0.0
    %v397 = vsel %vm388, %v367, 0.0
    %v398 = vsel %vm389, %v368, 0.0
    %v399 = vsel %vm387, %v369, 0.0
    %v400 = vsel %vm388, %v370, 0.0
    %v401 = vsel %vm389, %v371, 0.0
    %v402 = vsel %vm387, %v372, 0.0
    %v403 = vsel %vm388, %v373, 0.0
    %v404 = vsel %vm389, %v374, 0.0
    %v405 = vsel %vm387, %v375, 0.0
    %v406 = vsel %vm388, %v376, 0.0
    %v407 = vsel %vm389, %v377, 0.0
    %v408 = vsel %vm387, %v378, 0.0
    %v409 = vsel %vm388, %v379, 0.0
    %v410 = vsel %vm389, %v380, 0.0
    %v411 = vsel %vm387, %v381, 0.0
    %v412 = vsel %vm388, %v382, 0.0
    %v413 = vsel %vm389, %v383, 0.0
    %v414 = vpack.c.bf16 %v390, %v390
    %v415 = vpack.c.bf16 %v391, %v391
    %v416 = vpack.c.bf16 %v392, %v392
    %v417 = vpack.c.bf16 %v393, %v393
    %v418 = vpack.c.bf16 %v394, %v394
    %v419 = vpack.c.bf16 %v395, %v395
    %v420 = vpack.c.bf16 %v396, %v396
    %v421 = vpack.c.bf16 %v397, %v397
    %v422 = vpack.c.bf16 %v398, %v398
    %v423 = vpack.c.bf16 %v399, %v399
    %v424 = vpack.c.bf16 %v400, %v400
    %v425 = vpack.c.bf16 %v401, %v401
    %v426 = vpack.c.bf16 %v402, %v402
    %v427 = vpack.c.bf16 %v403, %v403
    %v428 = vpack.c.bf16 %v404, %v404
    %v429 = vpack.c.bf16 %v405, %v405
    %v430 = vpack.c.bf16 %v406, %v406
    %v431 = vpack.c.bf16 %v407, %v407
    %v432 = vpack.c.bf16 %v408, %v408
    %v433 = vpack.c.bf16 %v409, %v409
    %v434 = vpack.c.bf16 %v410, %v410
    %v435 = vpack.c.bf16 %v411, %v411
    %v436 = vpack.c.bf16 %v412, %v412
    %v437 = vpack.c.bf16 %v413, %v413
    %v438 = vld [vmem:[#allocation2] sm:$0xf]
    %v439 = vld [vmem:[#allocation2 + $0x4] sm:$0xf]
    %v440 = vld [vmem:[#allocation2 + $0x8] sm:$0xf]
    %v441 = vld [vmem:[#allocation2 + $0xc] sm:$0xf]
    %v442 = vld [vmem:[#allocation2 + $0x10] sm:$0xf]
    %v443 = vld [vmem:[#allocation2 + $0x14] sm:$0xf]
    %v444 = vld [vmem:[#allocation2 + $0x18] sm:$0xf]
    %v445 = vld [vmem:[#allocation2 + $0x1c] sm:$0xf]
    %v446 = vld [vmem:[#allocation2 + $0x20] sm:$0xf]
    %v447 = vld [vmem:[#allocation2 + $0x24] sm:$0xf]
    %v448 = vld [vmem:[#allocation2 + $0x28] sm:$0xf]
    %v449 = vld [vmem:[#allocation2 + $0x2c] sm:$0xf]
    %v450 = vld [vmem:[#allocation2 + $0x30] sm:$0xf]
    %v451 = vld [vmem:[#allocation2 + $0x34] sm:$0xf]
    %v452 = vld [vmem:[#allocation2 + $0x38] sm:$0xf]
    %v453 = vld [vmem:[#allocation2 + $0x3c] sm:$0xf]
    %v478 = vunpack.c.l.b16 %v414
    %v479 = vunpack.c.l.b16 %v415
    %v480 = vunpack.c.l.b16 %v416
    %v481 = vunpack.c.l.b16 %v417
    %v482 = vunpack.c.l.b16 %v418
    %v483 = vunpack.c.l.b16 %v419
    %v484 = vunpack.c.l.b16 %v420
    %v485 = vunpack.c.l.b16 %v421
    %v486 = vunpack.c.l.b16 %v422
    %v487 = vunpack.c.l.b16 %v423
    %v488 = vunpack.c.l.b16 %v424
    %v489 = vunpack.c.l.b16 %v425
    %v490 = vunpack.c.l.b16 %v426
    %v491 = vunpack.c.l.b16 %v427
    %v492 = vunpack.c.l.b16 %v428
    %v493 = vunpack.c.l.b16 %v429
    %v494 = vunpack.c.l.b16 %v430
    %v495 = vunpack.c.l.b16 %v431
    %v496 = vunpack.c.l.b16 %v432
    %v497 = vunpack.c.l.b16 %v433
    %v498 = vunpack.c.l.b16 %v434
    %v499 = vunpack.c.l.b16 %v435
    %v500 = vunpack.c.l.b16 %v436
    %v501 = vunpack.c.l.b16 %v437
    %v502 = vpack.c.b16 %v479, %v478
    %v503 = vpack.c.b16 %v481, %v480
    %v504 = vpack.c.b16 %v483, %v482
    %v505 = vpack.c.b16 %v485, %v484
    %v506 = vpack.c.b16 %v487, %v486
    %v507 = vpack.c.b16 %v489, %v488
    %v508 = vpack.c.b16 %v491, %v490
    %v509 = vpack.c.b16 %v493, %v492
    %v510 = vpack.c.b16 %v495, %v494
    %v511 = vpack.c.b16 %v497, %v496
    %v512 = vpack.c.b16 %v499, %v498
    %v513 = vpack.c.b16 %v501, %v500
    %v542 = vunpack.c.l.b16 %v438
    %v543 = vunpack.c.l.b16 %v439
    %v544 = vunpack.c.l.b16 %v440
    %v545 = vunpack.c.l.b16 %v441
    %v546 = vunpack.c.l.b16 %v442
    %v547 = vunpack.c.l.b16 %v443
    %v548 = vunpack.c.l.b16 %v444
    %v549 = vunpack.c.l.b16 %v445
    %v550 = vunpack.c.l.b16 %v446
    %v551 = vunpack.c.l.b16 %v447
    %v552 = vunpack.c.l.b16 %v448
    %v553 = vunpack.c.l.b16 %v449
    %v554 = vunpack.c.l.b16 %v450
    %v555 = vunpack.c.l.b16 %v451
    %v556 = vunpack.c.l.b16 %v452
    %v557 = vunpack.c.l.b16 %v453
    %v558 = vpack.c.b16 %v543, %v542
    %v559 = vpack.c.b16 %v545, %v544
    %v560 = vpack.c.b16 %v547, %v546
    %v561 = vpack.c.b16 %v549, %v548
    %v562 = vpack.c.b16 %v551, %v550
    %v563 = vpack.c.b16 %v553, %v552
    %v564 = vpack.c.b16 %v555, %v554
    %v565 = vpack.c.b16 %v557, %v556
    %574 = vmatpush.bf16.msra.mxu0 %v565
    %575 = vmatpush.bf16.msra.mxu0 %v564
    %576 = vmatpush.bf16.msra.mxu0 %v563
    %577 = vmatpush.bf16.msra.mxu0 %v562
    %578 = vmatpush.bf16.msra.mxu0 %v561
    %579 = vmatpush.bf16.msra.mxu0 %v560
    %580 = vmatpush.bf16.msra.mxu0 %v559
    %581 = vmatpush.bf16.msra.mxu0 %v558
    %582 = vmatmul.bf16.gmra.mxu0 %v502
    %v583 = vpop.f32.mrf.mxu0
    %v584 = vadd.f32 0.0, %v583
    %v585 = vpop.f32.mrf.mxu0
    %v586 = vadd.f32 0.0, %v585
    %587 = vmatmul.bf16.gmra.mxu0 %v503
    %v588 = vpop.f32.mrf.mxu0
    %v589 = vadd.f32 0.0, %v588
    %v590 = vpop.f32.mrf.mxu0
    %v591 = vadd.f32 0.0, %v590
    %592 = vmatmul.bf16.gmra.mxu0 %v504
    %v593 = vpop.f32.mrf.mxu0
    %v594 = vadd.f32 0.0, %v593
    %v595 = vpop.f32.mrf.mxu0
    %v596 = vadd.f32 0.0, %v595
    %597 = vmatmul.bf16.gmra.mxu0 %v505
    %v598 = vpop.f32.mrf.mxu0
    %v599 = vadd.f32 0.0, %v598
    %v600 = vpop.f32.mrf.mxu0
    %v601 = vadd.f32 0.0, %v600
    %602 = vmatmul.bf16.gmra.mxu0 %v506
    %v603 = vpop.f32.mrf.mxu0
    %v604 = vadd.f32 0.0, %v603
    %v605 = vpop.f32.mrf.mxu0
    %v606 = vadd.f32 0.0, %v605
    %607 = vmatmul.bf16.gmra.mxu0 %v507
    %v608 = vpop.f32.mrf.mxu0
    %v609 = vadd.f32 0.0, %v608
    %v610 = vpop.f32.mrf.mxu0
    %v611 = vadd.f32 0.0, %v610
    %612 = vmatmul.bf16.gmra.mxu0 %v508
    %v613 = vpop.f32.mrf.mxu0
    %v614 = vadd.f32 0.0, %v613
    %v615 = vpop.f32.mrf.mxu0
    %v616 = vadd.f32 0.0, %v615
    %617 = vmatmul.bf16.gmra.mxu0 %v509
    %v618 = vpop.f32.mrf.mxu0
    %v619 = vadd.f32 0.0, %v618
    %v620 = vpop.f32.mrf.mxu0
    %v621 = vadd.f32 0.0, %v620
    %622 = vmatmul.bf16.gmra.mxu0 %v510
    %v623 = vpop.f32.mrf.mxu0
    %v624 = vadd.f32 0.0, %v623
    %v625 = vpop.f32.mrf.mxu0
    %v626 = vadd.f32 0.0, %v625
    %627 = vmatmul.bf16.gmra.mxu0 %v511
    %v628 = vpop.f32.mrf.mxu0
    %v629 = vadd.f32 0.0, %v628
    %v630 = vpop.f32.mrf.mxu0
    %v631 = vadd.f32 0.0, %v630
    %632 = vmatmul.bf16.gmra.mxu0 %v512
    %v633 = vpop.f32.mrf.mxu0
    %v634 = vadd.f32 0.0, %v633
    %v635 = vpop.f32.mrf.mxu0
    %v636 = vadd.f32 0.0, %v635
    %637 = vmatmul.bf16.gmra.mxu0 %v513
    %v638 = vpop.f32.mrf.mxu0
    %v639 = vadd.f32 0.0, %v638
    %v640 = vpop.f32.mrf.mxu0
    %v641 = vadd.f32 0.0, %v640
    %642 = vdwg.mxu0
    %s643 = scalar_lea.vmem [#allocation2], 64
    %v644 = vld [vmem:[%s643] sm:$0xf]
    %v645 = vld [vmem:[%s643 + $0x4] sm:$0xf]
    %v646 = vld [vmem:[%s643 + $0x8] sm:$0xf]
    %v647 = vld [vmem:[%s643 + $0xc] sm:$0xf]
    %v648 = vld [vmem:[%s643 + $0x10] sm:$0xf]
    %v649 = vld [vmem:[%s643 + $0x14] sm:$0xf]
    %v650 = vld [vmem:[%s643 + $0x18] sm:$0xf]
    %v651 = vld [vmem:[%s643 + $0x1c] sm:$0xf]
    %v652 = vld [vmem:[%s643 + $0x20] sm:$0xf]
    %v653 = vld [vmem:[%s643 + $0x24] sm:$0xf]
    %v654 = vld [vmem:[%s643 + $0x28] sm:$0xf]
    %v655 = vld [vmem:[%s643 + $0x2c] sm:$0xf]
    %v656 = vld [vmem:[%s643 + $0x30] sm:$0xf]
    %v657 = vld [vmem:[%s643 + $0x34] sm:$0xf]
    %v658 = vld [vmem:[%s643 + $0x38] sm:$0xf]
    %v659 = vld [vmem:[%s643 + $0x3c] sm:$0xf]
    %s660 = scalar_lea.vmem [#allocation2], 128
    %v661 = vld [vmem:[%s660] sm:$0xf]
    %v662 = vld [vmem:[%s660 + $0x4] sm:$0xf]
    %v663 = vld [vmem:[%s660 + $0x8] sm:$0xf]
    %v664 = vld [vmem:[%s660 + $0xc] sm:$0xf]
    %v665 = vld [vmem:[%s660 + $0x10] sm:$0xf]
    %v666 = vld [vmem:[%s660 + $0x14] sm:$0xf]
    %v667 = vld [vmem:[%s660 + $0x18] sm:$0xf]
    %v668 = vld [vmem:[%s660 + $0x1c] sm:$0xf]
    %v669 = vld [vmem:[%s660 + $0x20] sm:$0xf]
    %v670 = vld [vmem:[%s660 + $0x24] sm:$0xf]
    %v671 = vld [vmem:[%s660 + $0x28] sm:$0xf]
    %v672 = vld [vmem:[%s660 + $0x2c] sm:$0xf]
    %v673 = vld [vmem:[%s660 + $0x30] sm:$0xf]
    %v674 = vld [vmem:[%s660 + $0x34] sm:$0xf]
    %v675 = vld [vmem:[%s660 + $0x38] sm:$0xf]
    %v676 = vld [vmem:[%s660 + $0x3c] sm:$0xf]
    %v693 = vunpack.c.l.b16 %v661
    %v694 = vunpack.c.l.b16 %v662
    %v695 = vunpack.c.l.b16 %v663
    %v696 = vunpack.c.l.b16 %v664
    %v697 = vunpack.c.l.b16 %v665
    %v698 = vunpack.c.l.b16 %v666
    %v699 = vunpack.c.l.b16 %v667
    %v700 = vunpack.c.l.b16 %v668
    %v701 = vunpack.c.l.b16 %v669
    %v702 = vunpack.c.l.b16 %v670
    %v703 = vunpack.c.l.b16 %v671
    %v704 = vunpack.c.l.b16 %v672
    %v705 = vunpack.c.l.b16 %v673
    %v706 = vunpack.c.l.b16 %v674
    %v707 = vunpack.c.l.b16 %v675
    %v708 = vunpack.c.l.b16 %v676
    %v709 = vpack.c.b16 %v694, %v693
    %v710 = vpack.c.b16 %v696, %v695
    %v711 = vpack.c.b16 %v698, %v697
    %v712 = vpack.c.b16 %v700, %v699
    %v713 = vpack.c.b16 %v702, %v701
    %v714 = vpack.c.b16 %v704, %v703
    %v715 = vpack.c.b16 %v706, %v705
    %v716 = vpack.c.b16 %v708, %v707
    %725 = vmatpush.bf16.msra.mxu0 %v716
    %726 = vmatpush.bf16.msra.mxu0 %v715
    %727 = vmatpush.bf16.msra.mxu0 %v714
    %728 = vmatpush.bf16.msra.mxu0 %v713
    %729 = vmatpush.bf16.msra.mxu0 %v712
    %730 = vmatpush.bf16.msra.mxu0 %v711
    %731 = vmatpush.bf16.msra.mxu0 %v710
    %732 = vmatpush.bf16.msra.mxu0 %v709
    %733 = vmatmul.bf16.gmra.mxu0 %v502
    %v734 = vpop.f32.mrf.mxu0
    %v735 = vadd.f32 0.0, %v734
    %v736 = vpop.f32.mrf.mxu0
    %v737 = vadd.f32 0.0, %v736
    %738 = vmatmul.bf16.gmra.mxu0 %v503
    %v739 = vpop.f32.mrf.mxu0
    %v740 = vadd.f32 0.0, %v739
    %v741 = vpop.f32.mrf.mxu0
    %v742 = vadd.f32 0.0, %v741
    %743 = vmatmul.bf16.gmra.mxu0 %v504
    %v744 = vpop.f32.mrf.mxu0
    %v745 = vadd.f32 0.0, %v744
    %v746 = vpop.f32.mrf.mxu0
    %v747 = vadd.f32 0.0, %v746
    %748 = vmatmul.bf16.gmra.mxu0 %v505
    %v749 = vpop.f32.mrf.mxu0
    %v750 = vadd.f32 0.0, %v749
    %v751 = vpop.f32.mrf.mxu0
    %v752 = vadd.f32 0.0, %v751
    %753 = vmatmul.bf16.gmra.mxu0 %v506
    %v754 = vpop.f32.mrf.mxu0
    %v755 = vadd.f32 0.0, %v754
    %v756 = vpop.f32.mrf.mxu0
    %v757 = vadd.f32 0.0, %v756
    %758 = vmatmul.bf16.gmra.mxu0 %v507
    %v759 = vpop.f32.mrf.mxu0
    %v760 = vadd.f32 0.0, %v759
    %v761 = vpop.f32.mrf.mxu0
    %v762 = vadd.f32 0.0, %v761
    %763 = vmatmul.bf16.gmra.mxu0 %v508
    %v764 = vpop.f32.mrf.mxu0
    %v765 = vadd.f32 0.0, %v764
    %v766 = vpop.f32.mrf.mxu0
    %v767 = vadd.f32 0.0, %v766
    %768 = vmatmul.bf16.gmra.mxu0 %v509
    %v769 = vpop.f32.mrf.mxu0
    %v770 = vadd.f32 0.0, %v769
    %v771 = vpop.f32.mrf.mxu0
    %v772 = vadd.f32 0.0, %v771
    %773 = vmatmul.bf16.gmra.mxu0 %v510
    %v774 = vpop.f32.mrf.mxu0
    %v775 = vadd.f32 0.0, %v774
    %v776 = vpop.f32.mrf.mxu0
    %v777 = vadd.f32 0.0, %v776
    %778 = vmatmul.bf16.gmra.mxu0 %v511
    %v779 = vpop.f32.mrf.mxu0
    %v780 = vadd.f32 0.0, %v779
    %v781 = vpop.f32.mrf.mxu0
    %v782 = vadd.f32 0.0, %v781
    %783 = vmatmul.bf16.gmra.mxu0 %v512
    %v784 = vpop.f32.mrf.mxu0
    %v785 = vadd.f32 0.0, %v784
    %v786 = vpop.f32.mrf.mxu0
    %v787 = vadd.f32 0.0, %v786
    %788 = vmatmul.bf16.gmra.mxu0 %v513
    %v789 = vpop.f32.mrf.mxu0
    %v790 = vadd.f32 0.0, %v789
    %v791 = vpop.f32.mrf.mxu0
    %v792 = vadd.f32 0.0, %v791
    %793 = vdwg.mxu0
    %v794 = vrot.slane %v584, 7
    %v795 = vrot.slane %v591, 7
    %v796 = vrot.slane %v599, 7
    %v797 = vrot.slane %v606, 7
    %v798 = vrot.slane %v614, 7
    %v799 = vrot.slane %v621, 7
    %v800 = vrot.slane %v629, 7
    %v801 = vrot.slane %v636, 7
    %v802 = vrot.slane %v586, 7
    %v803 = vrot.slane %v594, 7
    %v804 = vrot.slane %v601, 7
    %v805 = vrot.slane %v609, 7
    %v806 = vrot.slane %v616, 7
    %v807 = vrot.slane %v624, 7
    %v808 = vrot.slane %v631, 7
    %v809 = vrot.slane %v639, 7
    %v810 = vrot.slane %v589, 7
    %v811 = vrot.slane %v596, 7
    %v812 = vrot.slane %v604, 7
    %v813 = vrot.slane %v611, 7
    %v814 = vrot.slane %v619, 7
    %v815 = vrot.slane %v626, 7
    %v816 = vrot.slane %v634, 7
    %v817 = vrot.slane %v641, 7
    %vm818 = vcmp.lt.s32.totalorder %v103, 1
    %v819 = vsel %vm818, %v802, %v810
    %v820 = vsel %vm818, %v803, %v811
    %v821 = vsel %vm818, %v804, %v812
    %v822 = vsel %vm818, %v805, %v813
    %v823 = vsel %vm818, %v806, %v814
    %v824 = vsel %vm818, %v807, %v815
    %v825 = vsel %vm818, %v808, %v816
    %v826 = vsel %vm818, %v809, %v817
    %v827 = vsel %vm818, %v794, %v802
    %v828 = vsel %vm818, %v795, %v803
    %v829 = vsel %vm818, %v796, %v804
    %v830 = vsel %vm818, %v797, %v805
    %v831 = vsel %vm818, %v798, %v806
    %v832 = vsel %vm818, %v799, %v807
    %v833 = vsel %vm818, %v800, %v808
    %v834 = vsel %vm818, %v801, %v809
    %v835 = vsel %vm818, %v810, %v794
    %v836 = vsel %vm818, %v811, %v795
    %v837 = vsel %vm818, %v812, %v796
    %v838 = vsel %vm818, %v813, %v797
    %v839 = vsel %vm818, %v814, %v798
    %v840 = vsel %vm818, %v815, %v799
    %v841 = vsel %vm818, %v816, %v800
    %v842 = vsel %vm818, %v817, %v801
    %v859 = vunpack.c.l.b16 %v644
    %v860 = vunpack.c.l.b16 %v645
    %v861 = vunpack.c.l.b16 %v646
    %v862 = vunpack.c.l.b16 %v647
    %v863 = vunpack.c.l.b16 %v648
    %v864 = vunpack.c.l.b16 %v649
    %v865 = vunpack.c.l.b16 %v650
    %v866 = vunpack.c.l.b16 %v651
    %v867 = vunpack.c.l.b16 %v652
    %v868 = vunpack.c.l.b16 %v653
    %v869 = vunpack.c.l.b16 %v654
    %v870 = vunpack.c.l.b16 %v655
    %v871 = vunpack.c.l.b16 %v656
    %v872 = vunpack.c.l.b16 %v657
    %v873 = vunpack.c.l.b16 %v658
    %v874 = vunpack.c.l.b16 %v659
    %v875 = vpack.c.b16 %v860, %v859
    %v876 = vpack.c.b16 %v862, %v861
    %v877 = vpack.c.b16 %v864, %v863
    %v878 = vpack.c.b16 %v866, %v865
    %v879 = vpack.c.b16 %v868, %v867
    %v880 = vpack.c.b16 %v870, %v869
    %v881 = vpack.c.b16 %v872, %v871
    %v882 = vpack.c.b16 %v874, %v873
    %891 = vmatpush.bf16.msra.mxu0 %v882
    %892 = vmatpush.bf16.msra.mxu0 %v881
    %893 = vmatpush.bf16.msra.mxu0 %v880
    %894 = vmatpush.bf16.msra.mxu0 %v879
    %895 = vmatpush.bf16.msra.mxu0 %v878
    %896 = vmatpush.bf16.msra.mxu0 %v877
    %897 = vmatpush.bf16.msra.mxu0 %v876
    %898 = vmatpush.bf16.msra.mxu0 %v875
    %899 = vmatmul.bf16.gmra.mxu0 %v502
    %v900 = vpop.f32.mrf.mxu0
    %v901 = vadd.f32 %v835, %v900
    %v902 = vpop.f32.mrf.mxu0
    %v903 = vadd.f32 %v827, %v902
    %904 = vmatmul.bf16.gmra.mxu0 %v503
    %v905 = vpop.f32.mrf.mxu0
    %v906 = vadd.f32 %v819, %v905
    %v907 = vpop.f32.mrf.mxu0
    %v908 = vadd.f32 %v836, %v907
    %909 = vmatmul.bf16.gmra.mxu0 %v504
    %v910 = vpop.f32.mrf.mxu0
    %v911 = vadd.f32 %v828, %v910
    %v912 = vpop.f32.mrf.mxu0
    %v913 = vadd.f32 %v820, %v912
    %914 = vmatmul.bf16.gmra.mxu0 %v505
    %v915 = vpop.f32.mrf.mxu0
    %v916 = vadd.f32 %v837, %v915
    %v917 = vpop.f32.mrf.mxu0
    %v918 = vadd.f32 %v829, %v917
    %919 = vmatmul.bf16.gmra.mxu0 %v506
    %v920 = vpop.f32.mrf.mxu0
    %v921 = vadd.f32 %v821, %v920
    %v922 = vpop.f32.mrf.mxu0
    %v923 = vadd.f32 %v838, %v922
    %924 = vmatmul.bf16.gmra.mxu0 %v507
    %v925 = vpop.f32.mrf.mxu0
    %v926 = vadd.f32 %v830, %v925
    %v927 = vpop.f32.mrf.mxu0
    %v928 = vadd.f32 %v822, %v927
    %929 = vmatmul.bf16.gmra.mxu0 %v508
    %v930 = vpop.f32.mrf.mxu0
    %v931 = vadd.f32 %v839, %v930
    %v932 = vpop.f32.mrf.mxu0
    %v933 = vadd.f32 %v831, %v932
    %934 = vmatmul.bf16.gmra.mxu0 %v509
    %v935 = vpop.f32.mrf.mxu0
    %v936 = vadd.f32 %v823, %v935
    %v937 = vpop.f32.mrf.mxu0
    %v938 = vadd.f32 %v840, %v937
    %939 = vmatmul.bf16.gmra.mxu0 %v510
    %v940 = vpop.f32.mrf.mxu0
    %v941 = vadd.f32 %v832, %v940
    %v942 = vpop.f32.mrf.mxu0
    %v943 = vadd.f32 %v824, %v942
    %944 = vmatmul.bf16.gmra.mxu0 %v511
    %v945 = vpop.f32.mrf.mxu0
    %v946 = vadd.f32 %v841, %v945
    %v947 = vpop.f32.mrf.mxu0
    %v948 = vadd.f32 %v833, %v947
    %949 = vmatmul.bf16.gmra.mxu0 %v512
    %v950 = vpop.f32.mrf.mxu0
    %v951 = vadd.f32 %v825, %v950
    %v952 = vpop.f32.mrf.mxu0
    %v953 = vadd.f32 %v842, %v952
    %954 = vmatmul.bf16.gmra.mxu0 %v513
    %v955 = vpop.f32.mrf.mxu0
    %v956 = vadd.f32 %v834, %v955
    %v957 = vpop.f32.mrf.mxu0
    %v958 = vadd.f32 %v826, %v957
    %959 = vdwg.mxu0
    %v960 = vrot.slane %v735, 1
    %v961 = vrot.slane %v742, 1
    %v962 = vrot.slane %v750, 1
    %v963 = vrot.slane %v757, 1
    %v964 = vrot.slane %v765, 1
    %v965 = vrot.slane %v772, 1
    %v966 = vrot.slane %v780, 1
    %v967 = vrot.slane %v787, 1
    %v968 = vrot.slane %v737, 1
    %v969 = vrot.slane %v745, 1
    %v970 = vrot.slane %v752, 1
    %v971 = vrot.slane %v760, 1
    %v972 = vrot.slane %v767, 1
    %v973 = vrot.slane %v775, 1
    %v974 = vrot.slane %v782, 1
    %v975 = vrot.slane %v790, 1
    %v976 = vrot.slane %v740, 1
    %v977 = vrot.slane %v747, 1
    %v978 = vrot.slane %v755, 1
    %v979 = vrot.slane %v762, 1
    %v980 = vrot.slane %v770, 1
    %v981 = vrot.slane %v777, 1
    %v982 = vrot.slane %v785, 1
    %v983 = vrot.slane %v792, 1
    %vm984 = vcmp.lt.s32.totalorder %v103, 7
    %v985 = vsel %vm984, %v968, %v976
    %v986 = vsel %vm984, %v969, %v977
    %v987 = vsel %vm984, %v970, %v978
    %v988 = vsel %vm984, %v971, %v979
    %v989 = vsel %vm984, %v972, %v980
    %v990 = vsel %vm984, %v973, %v981
    %v991 = vsel %vm984, %v974, %v982
    %v992 = vsel %vm984, %v975, %v983
    %v993 = vsel %vm984, %v960, %v968
    %v994 = vsel %vm984, %v961, %v969
    %v995 = vsel %vm984, %v962, %v970
    %v996 = vsel %vm984, %v963, %v971
    %v997 = vsel %vm984, %v964, %v972
    %v998 = vsel %vm984, %v965, %v973
    %v999 = vsel %vm984, %v966, %v974
    %v1000 = vsel %vm984, %v967, %v975
    %v1001 = vsel %vm984, %v976, %v960
    %v1002 = vsel %vm984, %v977, %v961
    %v1003 = vsel %vm984, %v978, %v962
    %v1004 = vsel %vm984, %v979, %v963
    %v1005 = vsel %vm984, %v980, %v964
    %v1006 = vsel %vm984, %v981, %v965
    %v1007 = vsel %vm984, %v982, %v966
    %v1008 = vsel %vm984, %v983, %v967
    %v1009 = vadd.f32 %v901, %v993
    %v1010 = vadd.f32 %v903, %v985
    %v1011 = vadd.f32 %v906, %v1001
    %v1012 = vadd.f32 %v908, %v994
    %v1013 = vadd.f32 %v911, %v986
    %v1014 = vadd.f32 %v913, %v1002
    %v1015 = vadd.f32 %v916, %v995
    %v1016 = vadd.f32 %v918, %v987
    %v1017 = vadd.f32 %v921, %v1003
    %v1018 = vadd.f32 %v923, %v996
    %v1019 = vadd.f32 %v926, %v988
    %v1020 = vadd.f32 %v928, %v1004
    %v1021 = vadd.f32 %v931, %v997
    %v1022 = vadd.f32 %v933, %v989
    %v1023 = vadd.f32 %v936, %v1005
    %v1024 = vadd.f32 %v938, %v998
    %v1025 = vadd.f32 %v941, %v990
    %v1026 = vadd.f32 %v943, %v1006
    %v1027 = vadd.f32 %v946, %v999
    %v1028 = vadd.f32 %v948, %v991
    %v1029 = vadd.f32 %v951, %v1007
    %v1030 = vadd.f32 %v953, %v1000
    %v1031 = vadd.f32 %v956, %v992
    %v1032 = vadd.f32 %v958, %v1008
    %v1033 = vld [vmem:[%s5] sm:$0x1]
    %v1035 = vperm.slane %v1033, 0
    %v1037 = vmul.f32 %v1009, %v1035
    %v1038 = vmul.f32 %v1010, %v1035
    %v1039 = vmul.f32 %v1011, %v1035
    %v1040 = vmul.f32 %v1012, %v1035
    %v1041 = vmul.f32 %v1013, %v1035
    %v1042 = vmul.f32 %v1014, %v1035
    %v1043 = vmul.f32 %v1015, %v1035
    %v1044 = vmul.f32 %v1016, %v1035
    %v1045 = vmul.f32 %v1017, %v1035
    %v1046 = vmul.f32 %v1018, %v1035
    %v1047 = vmul.f32 %v1019, %v1035
    %v1048 = vmul.f32 %v1020, %v1035
    %v1049 = vmul.f32 %v1021, %v1035
    %v1050 = vmul.f32 %v1022, %v1035
    %v1051 = vmul.f32 %v1023, %v1035
    %v1052 = vmul.f32 %v1024, %v1035
    %v1053 = vmul.f32 %v1025, %v1035
    %v1054 = vmul.f32 %v1026, %v1035
    %v1055 = vmul.f32 %v1027, %v1035
    %v1056 = vmul.f32 %v1028, %v1035
    %v1057 = vmul.f32 %v1029, %v1035
    %v1058 = vmul.f32 %v1030, %v1035
    %v1059 = vmul.f32 %v1031, %v1035
    %v1060 = vmul.f32 %v1032, %v1035
    %v1061 = vld [vmem:[%s6] sm:$0x1]
    %v1063 = vperm.slane %v1061, 0
    %v1065 = vadd.f32 %v1037, %v1063
    %v1066 = vadd.f32 %v1038, %v1063
    %v1067 = vadd.f32 %v1039, %v1063
    %v1068 = vadd.f32 %v1040, %v1063
    %v1069 = vadd.f32 %v1041, %v1063
    %v1070 = vadd.f32 %v1042, %v1063
    %v1071 = vadd.f32 %v1043, %v1063
    %v1072 = vadd.f32 %v1044, %v1063
    %v1073 = vadd.f32 %v1045, %v1063
    %v1074 = vadd.f32 %v1046, %v1063
    %v1075 = vadd.f32 %v1047, %v1063
    %v1076 = vadd.f32 %v1048, %v1063
    %v1077 = vadd.f32 %v1049, %v1063
    %v1078 = vadd.f32 %v1050, %v1063
    %v1079 = vadd.f32 %v1051, %v1063
    %v1080 = vadd.f32 %v1052, %v1063
    %v1081 = vadd.f32 %v1053, %v1063
    %v1082 = vadd.f32 %v1054, %v1063
    %v1083 = vadd.f32 %v1055, %v1063
    %v1084 = vadd.f32 %v1056, %v1063
    %v1085 = vadd.f32 %v1057, %v1063
    %v1086 = vadd.f32 %v1058, %v1063
    %v1087 = vadd.f32 %v1059, %v1063
    %v1088 = vadd.f32 %v1060, %v1063
    %v1089 = vmax.f32 %v1065, 0.0
    %v1090 = vmax.f32 %v1066, 0.0
    %v1091 = vmax.f32 %v1067, 0.0
    %v1092 = vmax.f32 %v1068, 0.0
    %v1093 = vmax.f32 %v1069, 0.0
    %v1094 = vmax.f32 %v1070, 0.0
    %v1095 = vmax.f32 %v1071, 0.0
    %v1096 = vmax.f32 %v1072, 0.0
    %v1097 = vmax.f32 %v1073, 0.0
    %v1098 = vmax.f32 %v1074, 0.0
    %v1099 = vmax.f32 %v1075, 0.0
    %v1100 = vmax.f32 %v1076, 0.0
    %v1101 = vmax.f32 %v1077, 0.0
    %v1102 = vmax.f32 %v1078, 0.0
    %v1103 = vmax.f32 %v1079, 0.0
    %v1104 = vmax.f32 %v1080, 0.0
    %v1105 = vmax.f32 %v1081, 0.0
    %v1106 = vmax.f32 %v1082, 0.0
    %v1107 = vmax.f32 %v1083, 0.0
    %v1108 = vmax.f32 %v1084, 0.0
    %v1109 = vmax.f32 %v1085, 0.0
    %v1110 = vmax.f32 %v1086, 0.0
    %v1111 = vmax.f32 %v1087, 0.0
    %v1112 = vmax.f32 %v1088, 0.0
    %v1113 = vsel %vm387, %v1089, 0.0
    %v1114 = vsel %vm388, %v1090, 0.0
    %v1115 = vsel %vm389, %v1091, 0.0
    %v1116 = vsel %vm387, %v1092, 0.0
    %v1117 = vsel %vm388, %v1093, 0.0
    %v1118 = vsel %vm389, %v1094, 0.0
    %v1119 = vsel %vm387, %v1095, 0.0
    %v1120 = vsel %vm388, %v1096, 0.0
    %v1121 = vsel %vm389, %v1097, 0.0
    %v1122 = vsel %vm387, %v1098, 0.0
    %v1123 = vsel %vm388, %v1099, 0.0
    %v1124 = vsel %vm389, %v1100, 0.0
    %v1125 = vsel %vm387, %v1101, 0.0
    %v1126 = vsel %vm388, %v1102, 0.0
    %v1127 = vsel %vm389, %v1103, 0.0
    %v1128 = vsel %vm387, %v1104, 0.0
    %v1129 = vsel %vm388, %v1105, 0.0
    %v1130 = vsel %vm389, %v1106, 0.0
    %v1131 = vsel %vm387, %v1107, 0.0
    %v1132 = vsel %vm388, %v1108, 0.0
    %v1133 = vsel %vm389, %v1109, 0.0
    %v1134 = vsel %vm387, %v1110, 0.0
    %v1135 = vsel %vm388, %v1111, 0.0
    %v1136 = vsel %vm389, %v1112, 0.0
    %v1137 = vpack.c.bf16 %v1113, %v1113
    %v1138 = vpack.c.bf16 %v1114, %v1114
    %v1139 = vpack.c.bf16 %v1115, %v1115
    %v1140 = vpack.c.bf16 %v1116, %v1116
    %v1141 = vpack.c.bf16 %v1117, %v1117
    %v1142 = vpack.c.bf16 %v1118, %v1118
    %v1143 = vpack.c.bf16 %v1119, %v1119
    %v1144 = vpack.c.bf16 %v1120, %v1120
    %v1145 = vpack.c.bf16 %v1121, %v1121
    %v1146 = vpack.c.bf16 %v1122, %v1122
    %v1147 = vpack.c.bf16 %v1123, %v1123
    %v1148 = vpack.c.bf16 %v1124, %v1124
    %v1149 = vpack.c.bf16 %v1125, %v1125
    %v1150 = vpack.c.bf16 %v1126, %v1126
    %v1151 = vpack.c.bf16 %v1127, %v1127
    %v1152 = vpack.c.bf16 %v1128, %v1128
    %v1153 = vpack.c.bf16 %v1129, %v1129
    %v1154 = vpack.c.bf16 %v1130, %v1130
    %v1155 = vpack.c.bf16 %v1131, %v1131
    %v1156 = vpack.c.bf16 %v1132, %v1132
    %v1157 = vpack.c.bf16 %v1133, %v1133
    %v1158 = vpack.c.bf16 %v1134, %v1134
    %v1159 = vpack.c.bf16 %v1135, %v1135
    %v1160 = vpack.c.bf16 %v1136, %v1136
    %v1161 = vld [vmem:[#allocation5] sm:$0xf]
    %v1162 = vld [vmem:[#allocation5 + $0x4] sm:$0xf]
    %v1163 = vld [vmem:[#allocation5 + $0x8] sm:$0xf]
    %v1164 = vld [vmem:[#allocation5 + $0xc] sm:$0xf]
    %v1165 = vld [vmem:[#allocation5 + $0x10] sm:$0xf]
    %v1166 = vld [vmem:[#allocation5 + $0x14] sm:$0xf]
    %v1167 = vld [vmem:[#allocation5 + $0x18] sm:$0xf]
    %v1168 = vld [vmem:[#allocation5 + $0x1c] sm:$0xf]
    %v1169 = vld [vmem:[#allocation5 + $0x20] sm:$0xf]
    %v1170 = vld [vmem:[#allocation5 + $0x24] sm:$0xf]
    %v1171 = vld [vmem:[#allocation5 + $0x28] sm:$0xf]
    %v1172 = vld [vmem:[#allocation5 + $0x2c] sm:$0xf]
    %v1173 = vld [vmem:[#allocation5 + $0x30] sm:$0xf]
    %v1174 = vld [vmem:[#allocation5 + $0x34] sm:$0xf]
    %v1175 = vld [vmem:[#allocation5 + $0x38] sm:$0xf]
    %v1176 = vld [vmem:[#allocation5 + $0x3c] sm:$0xf]
    %v1201 = vunpack.c.l.b16 %v1137
    %v1202 = vunpack.c.l.b16 %v1138
    %v1203 = vunpack.c.l.b16 %v1139
    %v1204 = vunpack.c.l.b16 %v1140
    %v1205 = vunpack.c.l.b16 %v1141
    %v1206 = vunpack.c.l.b16 %v1142
    %v1207 = vunpack.c.l.b16 %v1143
    %v1208 = vunpack.c.l.b16 %v1144
    %v1209 = vunpack.c.l.b16 %v1145
    %v1210 = vunpack.c.l.b16 %v1146
    %v1211 = vunpack.c.l.b16 %v1147
    %v1212 = vunpack.c.l.b16 %v1148
    %v1213 = vunpack.c.l.b16 %v1149
    %v1214 = vunpack.c.l.b16 %v1150
    %v1215 = vunpack.c.l.b16 %v1151
    %v1216 = vunpack.c.l.b16 %v1152
    %v1217 = vunpack.c.l.b16 %v1153
    %v1218 = vunpack.c.l.b16 %v1154
    %v1219 = vunpack.c.l.b16 %v1155
    %v1220 = vunpack.c.l.b16 %v1156
    %v1221 = vunpack.c.l.b16 %v1157
    %v1222 = vunpack.c.l.b16 %v1158
    %v1223 = vunpack.c.l.b16 %v1159
    %v1224 = vunpack.c.l.b16 %v1160
    %v1225 = vpack.c.b16 %v1202, %v1201
    %v1226 = vpack.c.b16 %v1204, %v1203
    %v1227 = vpack.c.b16 %v1206, %v1205
    %v1228 = vpack.c.b16 %v1208, %v1207
    %v1229 = vpack.c.b16 %v1210, %v1209
    %v1230 = vpack.c.b16 %v1212, %v1211
    %v1231 = vpack.c.b16 %v1214, %v1213
    %v1232 = vpack.c.b16 %v1216, %v1215
    %v1233 = vpack.c.b16 %v1218, %v1217
    %v1234 = vpack.c.b16 %v1220, %v1219
    %v1235 = vpack.c.b16 %v1222, %v1221
    %v1236 = vpack.c.b16 %v1224, %v1223
    %v1265 = vunpack.c.l.b16 %v1161
    %v1266 = vunpack.c.l.b16 %v1162
    %v1267 = vunpack.c.l.b16 %v1163
    %v1268 = vunpack.c.l.b16 %v1164
    %v1269 = vunpack.c.l.b16 %v1165
    %v1270 = vunpack.c.l.b16 %v1166
    %v1271 = vunpack.c.l.b16 %v1167
    %v1272 = vunpack.c.l.b16 %v1168
    %v1273 = vunpack.c.l.b16 %v1169
    %v1274 = vunpack.c.l.b16 %v1170
    %v1275 = vunpack.c.l.b16 %v1171
    %v1276 = vunpack.c.l.b16 %v1172
    %v1277 = vunpack.c.l.b16 %v1173
    %v1278 = vunpack.c.l.b16 %v1174
    %v1279 = vunpack.c.l.b16 %v1175
    %v1280 = vunpack.c.l.b16 %v1176
    %v1281 = vpack.c.b16 %v1266, %v1265
    %v1282 = vpack.c.b16 %v1268, %v1267
    %v1283 = vpack.c.b16 %v1270, %v1269
    %v1284 = vpack.c.b16 %v1272, %v1271
    %v1285 = vpack.c.b16 %v1274, %v1273
    %v1286 = vpack.c.b16 %v1276, %v1275
    %v1287 = vpack.c.b16 %v1278, %v1277
    %v1288 = vpack.c.b16 %v1280, %v1279
    %1297 = vmatpush.bf16.msra.mxu0 %v1288
    %1298 = vmatpush.bf16.msra.mxu0 %v1287
    %1299 = vmatpush.bf16.msra.mxu0 %v1286
    %1300 = vmatpush.bf16.msra.mxu0 %v1285
    %1301 = vmatpush.bf16.msra.mxu0 %v1284
    %1302 = vmatpush.bf16.msra.mxu0 %v1283
    %1303 = vmatpush.bf16.msra.mxu0 %v1282
    %1304 = vmatpush.bf16.msra.mxu0 %v1281
    %1305 = vmatmul.bf16.gmra.mxu0 %v1225
    %v1306 = vpop.f32.mrf.mxu0
    %v1307 = vadd.f32 0.0, %v1306
    %v1308 = vpop.f32.mrf.mxu0
    %v1309 = vadd.f32 0.0, %v1308
    %1310 = vmatmul.bf16.gmra.mxu0 %v1226
    %v1311 = vpop.f32.mrf.mxu0
    %v1312 = vadd.f32 0.0, %v1311
    %v1313 = vpop.f32.mrf.mxu0
    %v1314 = vadd.f32 0.0, %v1313
    %1315 = vmatmul.bf16.gmra.mxu0 %v1227
    %v1316 = vpop.f32.mrf.mxu0
    %v1317 = vadd.f32 0.0, %v1316
    %v1318 = vpop.f32.mrf.mxu0
    %v1319 = vadd.f32 0.0, %v1318
    %1320 = vmatmul.bf16.gmra.mxu0 %v1228
    %v1321 = vpop.f32.mrf.mxu0
    %v1322 = vadd.f32 0.0, %v1321
    %v1323 = vpop.f32.mrf.mxu0
    %v1324 = vadd.f32 0.0, %v1323
    %1325 = vmatmul.bf16.gmra.mxu0 %v1229
    %v1326 = vpop.f32.mrf.mxu0
    %v1327 = vadd.f32 0.0, %v1326
    %v1328 = vpop.f32.mrf.mxu0
    %v1329 = vadd.f32 0.0, %v1328
    %1330 = vmatmul.bf16.gmra.mxu0 %v1230
    %v1331 = vpop.f32.mrf.mxu0
    %v1332 = vadd.f32 0.0, %v1331
    %v1333 = vpop.f32.mrf.mxu0
    %v1334 = vadd.f32 0.0, %v1333
    %1335 = vmatmul.bf16.gmra.mxu0 %v1231
    %v1336 = vpop.f32.mrf.mxu0
    %v1337 = vadd.f32 0.0, %v1336
    %v1338 = vpop.f32.mrf.mxu0
    %v1339 = vadd.f32 0.0, %v1338
    %1340 = vmatmul.bf16.gmra.mxu0 %v1232
    %v1341 = vpop.f32.mrf.mxu0
    %v1342 = vadd.f32 0.0, %v1341
    %v1343 = vpop.f32.mrf.mxu0
    %v1344 = vadd.f32 0.0, %v1343
    %1345 = vmatmul.bf16.gmra.mxu0 %v1233
    %v1346 = vpop.f32.mrf.mxu0
    %v1347 = vadd.f32 0.0, %v1346
    %v1348 = vpop.f32.mrf.mxu0
    %v1349 = vadd.f32 0.0, %v1348
    %1350 = vmatmul.bf16.gmra.mxu0 %v1234
    %v1351 = vpop.f32.mrf.mxu0
    %v1352 = vadd.f32 0.0, %v1351
    %v1353 = vpop.f32.mrf.mxu0
    %v1354 = vadd.f32 0.0, %v1353
    %1355 = vmatmul.bf16.gmra.mxu0 %v1235
    %v1356 = vpop.f32.mrf.mxu0
    %v1357 = vadd.f32 0.0, %v1356
    %v1358 = vpop.f32.mrf.mxu0
    %v1359 = vadd.f32 0.0, %v1358
    %1360 = vmatmul.bf16.gmra.mxu0 %v1236
    %v1361 = vpop.f32.mrf.mxu0
    %v1362 = vadd.f32 0.0, %v1361
    %v1363 = vpop.f32.mrf.mxu0
    %v1364 = vadd.f32 0.0, %v1363
    %1365 = vdwg.mxu0
    %s1366 = scalar_lea.vmem [#allocation5], 64
    %v1367 = vld [vmem:[%s1366] sm:$0xf]
    %v1368 = vld [vmem:[%s1366 + $0x4] sm:$0xf]
    %v1369 = vld [vmem:[%s1366 + $0x8] sm:$0xf]
    %v1370 = vld [vmem:[%s1366 + $0xc] sm:$0xf]
    %v1371 = vld [vmem:[%s1366 + $0x10] sm:$0xf]
    %v1372 = vld [vmem:[%s1366 + $0x14] sm:$0xf]
    %v1373 = vld [vmem:[%s1366 + $0x18] sm:$0xf]
    %v1374 = vld [vmem:[%s1366 + $0x1c] sm:$0xf]
    %v1375 = vld [vmem:[%s1366 + $0x20] sm:$0xf]
    %v1376 = vld [vmem:[%s1366 + $0x24] sm:$0xf]
    %v1377 = vld [vmem:[%s1366 + $0x28] sm:$0xf]
    %v1378 = vld [vmem:[%s1366 + $0x2c] sm:$0xf]
    %v1379 = vld [vmem:[%s1366 + $0x30] sm:$0xf]
    %v1380 = vld [vmem:[%s1366 + $0x34] sm:$0xf]
    %v1381 = vld [vmem:[%s1366 + $0x38] sm:$0xf]
    %v1382 = vld [vmem:[%s1366 + $0x3c] sm:$0xf]
    %s1383 = scalar_lea.vmem [#allocation5], 128
    %v1384 = vld [vmem:[%s1383] sm:$0xf]
    %v1385 = vld [vmem:[%s1383 + $0x4] sm:$0xf]
    %v1386 = vld [vmem:[%s1383 + $0x8] sm:$0xf]
    %v1387 = vld [vmem:[%s1383 + $0xc] sm:$0xf]
    %v1388 = vld [vmem:[%s1383 + $0x10] sm:$0xf]
    %v1389 = vld [vmem:[%s1383 + $0x14] sm:$0xf]
    %v1390 = vld [vmem:[%s1383 + $0x18] sm:$0xf]
    %v1391 = vld [vmem:[%s1383 + $0x1c] sm:$0xf]
    %v1392 = vld [vmem:[%s1383 + $0x20] sm:$0xf]
    %v1393 = vld [vmem:[%s1383 + $0x24] sm:$0xf]
    %v1394 = vld [vmem:[%s1383 + $0x28] sm:$0xf]
    %v1395 = vld [vmem:[%s1383 + $0x2c] sm:$0xf]
    %v1396 = vld [vmem:[%s1383 + $0x30] sm:$0xf]
    %v1397 = vld [vmem:[%s1383 + $0x34] sm:$0xf]
    %v1398 = vld [vmem:[%s1383 + $0x38] sm:$0xf]
    %v1399 = vld [vmem:[%s1383 + $0x3c] sm:$0xf]
    %v1416 = vunpack.c.l.b16 %v1384
    %v1417 = vunpack.c.l.b16 %v1385
    %v1418 = vunpack.c.l.b16 %v1386
    %v1419 = vunpack.c.l.b16 %v1387
    %v1420 = vunpack.c.l.b16 %v1388
    %v1421 = vunpack.c.l.b16 %v1389
    %v1422 = vunpack.c.l.b16 %v1390
    %v1423 = vunpack.c.l.b16 %v1391
    %v1424 = vunpack.c.l.b16 %v1392
    %v1425 = vunpack.c.l.b16 %v1393
    %v1426 = vunpack.c.l.b16 %v1394
    %v1427 = vunpack.c.l.b16 %v1395
    %v1428 = vunpack.c.l.b16 %v1396
    %v1429 = vunpack.c.l.b16 %v1397
    %v1430 = vunpack.c.l.b16 %v1398
    %v1431 = vunpack.c.l.b16 %v1399
    %v1432 = vpack.c.b16 %v1417, %v1416
    %v1433 = vpack.c.b16 %v1419, %v1418
    %v1434 = vpack.c.b16 %v1421, %v1420
    %v1435 = vpack.c.b16 %v1423, %v1422
    %v1436 = vpack.c.b16 %v1425, %v1424
    %v1437 = vpack.c.b16 %v1427, %v1426
    %v1438 = vpack.c.b16 %v1429, %v1428
    %v1439 = vpack.c.b16 %v1431, %v1430
    %1448 = vmatpush.bf16.msra.mxu0 %v1439
    %1449 = vmatpush.bf16.msra.mxu0 %v1438
    %1450 = vmatpush.bf16.msra.mxu0 %v1437
    %1451 = vmatpush.bf16.msra.mxu0 %v1436
    %1452 = vmatpush.bf16.msra.mxu0 %v1435
    %1453 = vmatpush.bf16.msra.mxu0 %v1434
    %1454 = vmatpush.bf16.msra.mxu0 %v1433
    %1455 = vmatpush.bf16.msra.mxu0 %v1432
    %1456 = vmatmul.bf16.gmra.mxu0 %v1225
    %v1457 = vpop.f32.mrf.mxu0
    %v1458 = vadd.f32 0.0, %v1457
    %v1459 = vpop.f32.mrf.mxu0
    %v1460 = vadd.f32 0.0, %v1459
    %1461 = vmatmul.bf16.gmra.mxu0 %v1226
    %v1462 = vpop.f32.mrf.mxu0
    %v1463 = vadd.f32 0.0, %v1462
    %v1464 = vpop.f32.mrf.mxu0
    %v1465 = vadd.f32 0.0, %v1464
    %1466 = vmatmul.bf16.gmra.mxu0 %v1227
    %v1467 = vpop.f32.mrf.mxu0
    %v1468 = vadd.f32 0.0, %v1467
    %v1469 = vpop.f32.mrf.mxu0
    %v1470 = vadd.f32 0.0, %v1469
    %1471 = vmatmul.bf16.gmra.mxu0 %v1228
    %v1472 = vpop.f32.mrf.mxu0
    %v1473 = vadd.f32 0.0, %v1472
    %v1474 = vpop.f32.mrf.mxu0
    %v1475 = vadd.f32 0.0, %v1474
    %1476 = vmatmul.bf16.gmra.mxu0 %v1229
    %v1477 = vpop.f32.mrf.mxu0
    %v1478 = vadd.f32 0.0, %v1477
    %v1479 = vpop.f32.mrf.mxu0
    %v1480 = vadd.f32 0.0, %v1479
    %1481 = vmatmul.bf16.gmra.mxu0 %v1230
    %v1482 = vpop.f32.mrf.mxu0
    %v1483 = vadd.f32 0.0, %v1482
    %v1484 = vpop.f32.mrf.mxu0
    %v1485 = vadd.f32 0.0, %v1484
    %1486 = vmatmul.bf16.gmra.mxu0 %v1231
    %v1487 = vpop.f32.mrf.mxu0
    %v1488 = vadd.f32 0.0, %v1487
    %v1489 = vpop.f32.mrf.mxu0
    %v1490 = vadd.f32 0.0, %v1489
    %1491 = vmatmul.bf16.gmra.mxu0 %v1232
    %v1492 = vpop.f32.mrf.mxu0
    %v1493 = vadd.f32 0.0, %v1492
    %v1494 = vpop.f32.mrf.mxu0
    %v1495 = vadd.f32 0.0, %v1494
    %1496 = vmatmul.bf16.gmra.mxu0 %v1233
    %v1497 = vpop.f32.mrf.mxu0
    %v1498 = vadd.f32 0.0, %v1497
    %v1499 = vpop.f32.mrf.mxu0
    %v1500 = vadd.f32 0.0, %v1499
    %1501 = vmatmul.bf16.gmra.mxu0 %v1234
    %v1502 = vpop.f32.mrf.mxu0
    %v1503 = vadd.f32 0.0, %v1502
    %v1504 = vpop.f32.mrf.mxu0
    %v1505 = vadd.f32 0.0, %v1504
    %1506 = vmatmul.bf16.gmra.mxu0 %v1235
    %v1507 = vpop.f32.mrf.mxu0
    %v1508 = vadd.f32 0.0, %v1507
    %v1509 = vpop.f32.mrf.mxu0
    %v1510 = vadd.f32 0.0, %v1509
    %1511 = vmatmul.bf16.gmra.mxu0 %v1236
    %v1512 = vpop.f32.mrf.mxu0
    %v1513 = vadd.f32 0.0, %v1512
    %v1514 = vpop.f32.mrf.mxu0
    %v1515 = vadd.f32 0.0, %v1514
    %1516 = vdwg.mxu0
    %v1517 = vrot.slane %v1307, 7
    %v1518 = vrot.slane %v1314, 7
    %v1519 = vrot.slane %v1322, 7
    %v1520 = vrot.slane %v1329, 7
    %v1521 = vrot.slane %v1337, 7
    %v1522 = vrot.slane %v1344, 7
    %v1523 = vrot.slane %v1352, 7
    %v1524 = vrot.slane %v1359, 7
    %v1525 = vrot.slane %v1309, 7
    %v1526 = vrot.slane %v1317, 7
    %v1527 = vrot.slane %v1324, 7
    %v1528 = vrot.slane %v1332, 7
    %v1529 = vrot.slane %v1339, 7
    %v1530 = vrot.slane %v1347, 7
    %v1531 = vrot.slane %v1354, 7
    %v1532 = vrot.slane %v1362, 7
    %v1533 = vrot.slane %v1312, 7
    %v1534 = vrot.slane %v1319, 7
    %v1535 = vrot.slane %v1327, 7
    %v1536 = vrot.slane %v1334, 7
    %v1537 = vrot.slane %v1342, 7
    %v1538 = vrot.slane %v1349, 7
    %v1539 = vrot.slane %v1357, 7
    %v1540 = vrot.slane %v1364, 7
    %v1541 = vsel %vm818, %v1525, %v1533
    %v1542 = vsel %vm818, %v1526, %v1534
    %v1543 = vsel %vm818, %v1527, %v1535
    %v1544 = vsel %vm818, %v1528, %v1536
    %v1545 = vsel %vm818, %v1529, %v1537
    %v1546 = vsel %vm818, %v1530, %v1538
    %v1547 = vsel %vm818, %v1531, %v1539
    %v1548 = vsel %vm818, %v1532, %v1540
    %v1549 = vsel %vm818, %v1517, %v1525
    %v1550 = vsel %vm818, %v1518, %v1526
    %v1551 = vsel %vm818, %v1519, %v1527
    %v1552 = vsel %vm818, %v1520, %v1528
    %v1553 = vsel %vm818, %v1521, %v1529
    %v1554 = vsel %vm818, %v1522, %v1530
    %v1555 = vsel %vm818, %v1523, %v1531
    %v1556 = vsel %vm818, %v1524, %v1532
    %v1557 = vsel %vm818, %v1533, %v1517
    %v1558 = vsel %vm818, %v1534, %v1518
    %v1559 = vsel %vm818, %v1535, %v1519
    %v1560 = vsel %vm818, %v1536, %v1520
    %v1561 = vsel %vm818, %v1537, %v1521
    %v1562 = vsel %vm818, %v1538, %v1522
    %v1563 = vsel %vm818, %v1539, %v1523
    %v1564 = vsel %vm818, %v1540, %v1524
    %v1581 = vunpack.c.l.b16 %v1367
    %v1582 = vunpack.c.l.b16 %v1368
    %v1583 = vunpack.c.l.b16 %v1369
    %v1584 = vunpack.c.l.b16 %v1370
    %v1585 = vunpack.c.l.b16 %v1371
    %v1586 = vunpack.c.l.b16 %v1372
    %v1587 = vunpack.c.l.b16 %v1373
    %v1588 = vunpack.c.l.b16 %v1374
    %v1589 = vunpack.c.l.b16 %v1375
    %v1590 = vunpack.c.l.b16 %v1376
    %v1591 = vunpack.c.l.b16 %v1377
    %v1592 = vunpack.c.l.b16 %v1378
    %v1593 = vunpack.c.l.b16 %v1379
    %v1594 = vunpack.c.l.b16 %v1380
    %v1595 = vunpack.c.l.b16 %v1381
    %v1596 = vunpack.c.l.b16 %v1382
    %v1597 = vpack.c.b16 %v1582, %v1581
    %v1598 = vpack.c.b16 %v1584, %v1583
    %v1599 = vpack.c.b16 %v1586, %v1585
    %v1600 = vpack.c.b16 %v1588, %v1587
    %v1601 = vpack.c.b16 %v1590, %v1589
    %v1602 = vpack.c.b16 %v1592, %v1591
    %v1603 = vpack.c.b16 %v1594, %v1593
    %v1604 = vpack.c.b16 %v1596, %v1595
    %1613 = vmatpush.bf16.msra.mxu0 %v1604
    %1614 = vmatpush.bf16.msra.mxu0 %v1603
    %1615 = vmatpush.bf16.msra.mxu0 %v1602
    %1616 = vmatpush.bf16.msra.mxu0 %v1601
    %1617 = vmatpush.bf16.msra.mxu0 %v1600
    %1618 = vmatpush.bf16.msra.mxu0 %v1599
    %1619 = vmatpush.bf16.msra.mxu0 %v1598
    %1620 = vmatpush.bf16.msra.mxu0 %v1597
    %1621 = vmatmul.bf16.gmra.mxu0 %v1225
    %v1622 = vpop.f32.mrf.mxu0
    %v1623 = vadd.f32 %v1557, %v1622
    %v1624 = vpop.f32.mrf.mxu0
    %v1625 = vadd.f32 %v1549, %v1624
    %1626 = vmatmul.bf16.gmra.mxu0 %v1226
    %v1627 = vpop.f32.mrf.mxu0
    %v1628 = vadd.f32 %v1541, %v1627
    %v1629 = vpop.f32.mrf.mxu0
    %v1630 = vadd.f32 %v1558, %v1629
    %1631 = vmatmul.bf16.gmra.mxu0 %v1227
    %v1632 = vpop.f32.mrf.mxu0
    %v1633 = vadd.f32 %v1550, %v1632
    %v1634 = vpop.f32.mrf.mxu0
    %v1635 = vadd.f32 %v1542, %v1634
    %1636 = vmatmul.bf16.gmra.mxu0 %v1228
    %v1637 = vpop.f32.mrf.mxu0
    %v1638 = vadd.f32 %v1559, %v1637
    %v1639 = vpop.f32.mrf.mxu0
    %v1640 = vadd.f32 %v1551, %v1639
    %1641 = vmatmul.bf16.gmra.mxu0 %v1229
    %v1642 = vpop.f32.mrf.mxu0
    %v1643 = vadd.f32 %v1543, %v1642
    %v1644 = vpop.f32.mrf.mxu0
    %v1645 = vadd.f32 %v1560, %v1644
    %1646 = vmatmul.bf16.gmra.mxu0 %v1230
    %v1647 = vpop.f32.mrf.mxu0
    %v1648 = vadd.f32 %v1552, %v1647
    %v1649 = vpop.f32.mrf.mxu0
    %v1650 = vadd.f32 %v1544, %v1649
    %1651 = vmatmul.bf16.gmra.mxu0 %v1231
    %v1652 = vpop.f32.mrf.mxu0
    %v1653 = vadd.f32 %v1561, %v1652
    %v1654 = vpop.f32.mrf.mxu0
    %v1655 = vadd.f32 %v1553, %v1654
    %1656 = vmatmul.bf16.gmra.mxu0 %v1232
    %v1657 = vpop.f32.mrf.mxu0
    %v1658 = vadd.f32 %v1545, %v1657
    %v1659 = vpop.f32.mrf.mxu0
    %v1660 = vadd.f32 %v1562, %v1659
    %1661 = vmatmul.bf16.gmra.mxu0 %v1233
    %v1662 = vpop.f32.mrf.mxu0
    %v1663 = vadd.f32 %v1554, %v1662
    %v1664 = vpop.f32.mrf.mxu0
    %v1665 = vadd.f32 %v1546, %v1664
    %1666 = vmatmul.bf16.gmra.mxu0 %v1234
    %v1667 = vpop.f32.mrf.mxu0
    %v1668 = vadd.f32 %v1563, %v1667
    %v1669 = vpop.f32.mrf.mxu0
    %v1670 = vadd.f32 %v1555, %v1669
    %1671 = vmatmul.bf16.gmra.mxu0 %v1235
    %v1672 = vpop.f32.mrf.mxu0
    %v1673 = vadd.f32 %v1547, %v1672
    %v1674 = vpop.f32.mrf.mxu0
    %v1675 = vadd.f32 %v1564, %v1674
    %1676 = vmatmul.bf16.gmra.mxu0 %v1236
    %v1677 = vpop.f32.mrf.mxu0
    %v1678 = vadd.f32 %v1556, %v1677
    %v1679 = vpop.f32.mrf.mxu0
    %v1680 = vadd.f32 %v1548, %v1679
    %1681 = vdwg.mxu0
    %v1682 = vrot.slane %v1458, 1
    %v1683 = vrot.slane %v1465, 1
    %v1684 = vrot.slane %v1473, 1
    %v1685 = vrot.slane %v1480, 1
    %v1686 = vrot.slane %v1488, 1
    %v1687 = vrot.slane %v1495, 1
    %v1688 = vrot.slane %v1503, 1
    %v1689 = vrot.slane %v1510, 1
    %v1690 = vrot.slane %v1460, 1
    %v1691 = vrot.slane %v1468, 1
    %v1692 = vrot.slane %v1475, 1
    %v1693 = vrot.slane %v1483, 1
    %v1694 = vrot.slane %v1490, 1
    %v1695 = vrot.slane %v1498, 1
    %v1696 = vrot.slane %v1505, 1
    %v1697 = vrot.slane %v1513, 1
    %v1698 = vrot.slane %v1463, 1
    %v1699 = vrot.slane %v1470, 1
    %v1700 = vrot.slane %v1478, 1
    %v1701 = vrot.slane %v1485, 1
    %v1702 = vrot.slane %v1493, 1
    %v1703 = vrot.slane %v1500, 1
    %v1704 = vrot.slane %v1508, 1
    %v1705 = vrot.slane %v1515, 1
    %v1706 = vsel %vm984, %v1690, %v1698
    %v1707 = vsel %vm984, %v1691, %v1699
    %v1708 = vsel %vm984, %v1692, %v1700
    %v1709 = vsel %vm984, %v1693, %v1701
    %v1710 = vsel %vm984, %v1694, %v1702
    %v1711 = vsel %vm984, %v1695, %v1703
    %v1712 = vsel %vm984, %v1696, %v1704
    %v1713 = vsel %vm984, %v1697, %v1705
    %v1714 = vsel %vm984, %v1682, %v1690
    %v1715 = vsel %vm984, %v1683, %v1691
    %v1716 = vsel %vm984, %v1684, %v1692
    %v1717 = vsel %vm984, %v1685, %v1693
    %v1718 = vsel %vm984, %v1686, %v1694
    %v1719 = vsel %vm984, %v1687, %v1695
    %v1720 = vsel %vm984, %v1688, %v1696
    %v1721 = vsel %vm984, %v1689, %v1697
    %v1722 = vsel %vm984, %v1698, %v1682
    %v1723 = vsel %vm984, %v1699, %v1683
    %v1724 = vsel %vm984, %v1700, %v1684
    %v1725 = vsel %vm984, %v1701, %v1685
    %v1726 = vsel %vm984, %v1702, %v1686
    %v1727 = vsel %vm984, %v1703, %v1687
    %v1728 = vsel %vm984, %v1704, %v1688
    %v1729 = vsel %vm984, %v1705, %v1689
    %v1730 = vadd.f32 %v1623, %v1714
    %v1731 = vadd.f32 %v1625, %v1706
    %v1732 = vadd.f32 %v1628, %v1722
    %v1733 = vadd.f32 %v1630, %v1715
    %v1734 = vadd.f32 %v1633, %v1707
    %v1735 = vadd.f32 %v1635, %v1723
    %v1736 = vadd.f32 %v1638, %v1716
    %v1737 = vadd.f32 %v1640, %v1708
    %v1738 = vadd.f32 %v1643, %v1724
    %v1739 = vadd.f32 %v1645, %v1717
    %v1740 = vadd.f32 %v1648, %v1709
    %v1741 = vadd.f32 %v1650, %v1725
    %v1742 = vadd.f32 %v1653, %v1718
    %v1743 = vadd.f32 %v1655, %v1710
    %v1744 = vadd.f32 %v1658, %v1726
    %v1745 = vadd.f32 %v1660, %v1719
    %v1746 = vadd.f32 %v1663, %v1711
    %v1747 = vadd.f32 %v1665, %v1727
    %v1748 = vadd.f32 %v1668, %v1720
    %v1749 = vadd.f32 %v1670, %v1712
    %v1750 = vadd.f32 %v1673, %v1728
    %v1751 = vadd.f32 %v1675, %v1721
    %v1752 = vadd.f32 %v1678, %v1713
    %v1753 = vadd.f32 %v1680, %v1729
    %v1754 = vld [vmem:[%s8] sm:$0x1]
    %v1756 = vperm.slane %v1754, 0
    %v1758 = vmul.f32 %v1730, %v1756
    %v1759 = vmul.f32 %v1731, %v1756
    %v1760 = vmul.f32 %v1732, %v1756
    %v1761 = vmul.f32 %v1733, %v1756
    %v1762 = vmul.f32 %v1734, %v1756
    %v1763 = vmul.f32 %v1735, %v1756
    %v1764 = vmul.f32 %v1736, %v1756
    %v1765 = vmul.f32 %v1737, %v1756
    %v1766 = vmul.f32 %v1738, %v1756
    %v1767 = vmul.f32 %v1739, %v1756
    %v1768 = vmul.f32 %v1740, %v1756
    %v1769 = vmul.f32 %v1741, %v1756
    %v1770 = vmul.f32 %v1742, %v1756
    %v1771 = vmul.f32 %v1743, %v1756
    %v1772 = vmul.f32 %v1744, %v1756
    %v1773 = vmul.f32 %v1745, %v1756
    %v1774 = vmul.f32 %v1746, %v1756
    %v1775 = vmul.f32 %v1747, %v1756
    %v1776 = vmul.f32 %v1748, %v1756
    %v1777 = vmul.f32 %v1749, %v1756
    %v1778 = vmul.f32 %v1750, %v1756
    %v1779 = vmul.f32 %v1751, %v1756
    %v1780 = vmul.f32 %v1752, %v1756
    %v1781 = vmul.f32 %v1753, %v1756
    %v1782 = vld [vmem:[#allocation7] sm:$0x1]
    %v1784 = vperm.slane %v1782, 0
    %v1786 = vadd.f32 %v1758, %v1784
    %v1787 = vadd.f32 %v1759, %v1784
    %v1788 = vadd.f32 %v1760, %v1784
    %v1789 = vadd.f32 %v1761, %v1784
    %v1790 = vadd.f32 %v1762, %v1784
    %v1791 = vadd.f32 %v1763, %v1784
    %v1792 = vadd.f32 %v1764, %v1784
    %v1793 = vadd.f32 %v1765, %v1784
    %v1794 = vadd.f32 %v1766, %v1784
    %v1795 = vadd.f32 %v1767, %v1784
    %v1796 = vadd.f32 %v1768, %v1784
    %v1797 = vadd.f32 %v1769, %v1784
    %v1798 = vadd.f32 %v1770, %v1784
    %v1799 = vadd.f32 %v1771, %v1784
    %v1800 = vadd.f32 %v1772, %v1784
    %v1801 = vadd.f32 %v1773, %v1784
    %v1802 = vadd.f32 %v1774, %v1784
    %v1803 = vadd.f32 %v1775, %v1784
    %v1804 = vadd.f32 %v1776, %v1784
    %v1805 = vadd.f32 %v1777, %v1784
    %v1806 = vadd.f32 %v1778, %v1784
    %v1807 = vadd.f32 %v1779, %v1784
    %v1808 = vadd.f32 %v1780, %v1784
    %v1809 = vadd.f32 %v1781, %v1784
    %v1810 = vmax.f32 %v1786, 0.0
    %v1811 = vmax.f32 %v1787, 0.0
    %v1812 = vmax.f32 %v1788, 0.0
    %v1813 = vmax.f32 %v1789, 0.0
    %v1814 = vmax.f32 %v1790, 0.0
    %v1815 = vmax.f32 %v1791, 0.0
    %v1816 = vmax.f32 %v1792, 0.0
    %v1817 = vmax.f32 %v1793, 0.0
    %v1818 = vmax.f32 %v1794, 0.0
    %v1819 = vmax.f32 %v1795, 0.0
    %v1820 = vmax.f32 %v1796, 0.0
    %v1821 = vmax.f32 %v1797, 0.0
    %v1822 = vmax.f32 %v1798, 0.0
    %v1823 = vmax.f32 %v1799, 0.0
    %v1824 = vmax.f32 %v1800, 0.0
    %v1825 = vmax.f32 %v1801, 0.0
    %v1826 = vmax.f32 %v1802, 0.0
    %v1827 = vmax.f32 %v1803, 0.0
    %v1828 = vmax.f32 %v1804, 0.0
    %v1829 = vmax.f32 %v1805, 0.0
    %v1830 = vmax.f32 %v1806, 0.0
    %v1831 = vmax.f32 %v1807, 0.0
    %v1832 = vmax.f32 %v1808, 0.0
    %v1833 = vmax.f32 %v1809, 0.0
    %v1834 = vsel %vm387, %v1810, 0.0
    %v1835 = vsel %vm388, %v1811, 0.0
    %v1836 = vsel %vm389, %v1812, 0.0
    %v1837 = vsel %vm387, %v1813, 0.0
    %v1838 = vsel %vm388, %v1814, 0.0
    %v1839 = vsel %vm389, %v1815, 0.0
    %v1840 = vsel %vm387, %v1816, 0.0
    %v1841 = vsel %vm388, %v1817, 0.0
    %v1842 = vsel %vm389, %v1818, 0.0
    %v1843 = vsel %vm387, %v1819, 0.0
    %v1844 = vsel %vm388, %v1820, 0.0
    %v1845 = vsel %vm389, %v1821, 0.0
    %v1846 = vsel %vm387, %v1822, 0.0
    %v1847 = vsel %vm388, %v1823, 0.0
    %v1848 = vsel %vm389, %v1824, 0.0
    %v1849 = vsel %vm387, %v1825, 0.0
    %v1850 = vsel %vm388, %v1826, 0.0
    %v1851 = vsel %vm389, %v1827, 0.0
    %v1852 = vsel %vm387, %v1828, 0.0
    %v1853 = vsel %vm388, %v1829, 0.0
    %v1854 = vsel %vm389, %v1830, 0.0
    %v1855 = vsel %vm387, %v1831, 0.0
    %v1856 = vsel %vm388, %v1832, 0.0
    %v1857 = vsel %vm389, %v1833, 0.0
    %v1858 = vadd.f32 %v1834, %v1835
    %v1859 = vadd.f32 %v1858, %v1836
    %v1860 = vrot.slane %v1859, 4
    %v1861 = vadd.f32 %v1859, %v1860
    %v1862 = vrot.slane %v1861, 2
    %v1863 = vadd.f32 %v1861, %v1862
    %v1864 = vrot.slane %v1863, 1
    %v1865 = vadd.f32 %v1863, %v1864
    %v1866 = vadd.f32 %v1837, %v1838
    %v1867 = vadd.f32 %v1866, %v1839
    %v1868 = vrot.slane %v1867, 4
    %v1869 = vadd.f32 %v1867, %v1868
    %v1870 = vrot.slane %v1869, 2
    %v1871 = vadd.f32 %v1869, %v1870
    %v1872 = vrot.slane %v1871, 1
    %v1873 = vadd.f32 %v1871, %v1872
    %v1874 = vadd.f32 %v1840, %v1841
    %v1875 = vadd.f32 %v1874, %v1842
    %v1876 = vrot.slane %v1875, 4
    %v1877 = vadd.f32 %v1875, %v1876
    %v1878 = vrot.slane %v1877, 2
    %v1879 = vadd.f32 %v1877, %v1878
    %v1880 = vrot.slane %v1879, 1
    %v1881 = vadd.f32 %v1879, %v1880
    %v1882 = vadd.f32 %v1843, %v1844
    %v1883 = vadd.f32 %v1882, %v1845
    %v1884 = vrot.slane %v1883, 4
    %v1885 = vadd.f32 %v1883, %v1884
    %v1886 = vrot.slane %v1885, 2
    %v1887 = vadd.f32 %v1885, %v1886
    %v1888 = vrot.slane %v1887, 1
    %v1889 = vadd.f32 %v1887, %v1888
    %v1890 = vadd.f32 %v1846, %v1847
    %v1891 = vadd.f32 %v1890, %v1848
    %v1892 = vrot.slane %v1891, 4
    %v1893 = vadd.f32 %v1891, %v1892
    %v1894 = vrot.slane %v1893, 2
    %v1895 = vadd.f32 %v1893, %v1894
    %v1896 = vrot.slane %v1895, 1
    %v1897 = vadd.f32 %v1895, %v1896
    %v1898 = vadd.f32 %v1849, %v1850
    %v1899 = vadd.f32 %v1898, %v1851
    %v1900 = vrot.slane %v1899, 4
    %v1901 = vadd.f32 %v1899, %v1900
    %v1902 = vrot.slane %v1901, 2
    %v1903 = vadd.f32 %v1901, %v1902
    %v1904 = vrot.slane %v1903, 1
    %v1905 = vadd.f32 %v1903, %v1904
    %v1906 = vadd.f32 %v1852, %v1853
    %v1907 = vadd.f32 %v1906, %v1854
    %v1908 = vrot.slane %v1907, 4
    %v1909 = vadd.f32 %v1907, %v1908
    %v1910 = vrot.slane %v1909, 2
    %v1911 = vadd.f32 %v1909, %v1910
    %v1912 = vrot.slane %v1911, 1
    %v1913 = vadd.f32 %v1911, %v1912
    %v1914 = vadd.f32 %v1855, %v1856
    %v1915 = vadd.f32 %v1914, %v1857
    %v1916 = vrot.slane %v1915, 4
    %v1917 = vadd.f32 %v1915, %v1916
    %v1918 = vrot.slane %v1917, 2
    %v1919 = vadd.f32 %v1917, %v1918
    %v1920 = vrot.slane %v1919, 1
    %v1921 = vadd.f32 %v1919, %v1920
    %v1922 = vmul.f32 %v1865, 0.0625
    %v1923 = vmul.f32 %v1873, 0.0625
    %v1924 = vmul.f32 %v1881, 0.0625
    %v1925 = vmul.f32 %v1889, 0.0625
    %v1926 = vmul.f32 %v1897, 0.0625
    %v1927 = vmul.f32 %v1905, 0.0625
    %v1928 = vmul.f32 %v1913, 0.0625
    %v1929 = vmul.f32 %v1921, 0.0625
    %v1930 = vld [vmem:[%s10] sm:$0xff]
    %v1931 = vld [vmem:[%s10 + $0x8] sm:$0xff]
    %v1932 = vld [vmem:[%s10 + $0x10] sm:$0xff]
    %v1933 = vld [vmem:[%s10 + $0x18] sm:$0xff]
    %v1934 = vld [vmem:[%s10 + $0x20] sm:$0xff]
    %v1935 = vld [vmem:[%s10 + $0x28] sm:$0xff]
    %v1936 = vld [vmem:[%s10 + $0x30] sm:$0xff]
    %v1937 = vld [vmem:[%s10 + $0x38] sm:$0xff]
    %v1938 = vld [vmem:[%s10 + $0x40] sm:$0xff]
    %v1939 = vld [vmem:[%s10 + $0x48] sm:$0xff]
    %v1940 = vld [vmem:[%s10 + $0x50] sm:$0xff]
    %v1941 = vld [vmem:[%s10 + $0x58] sm:$0xff]
    %v1942 = vld [vmem:[%s10 + $0x60] sm:$0xff]
    %v1943 = vld [vmem:[%s10 + $0x68] sm:$0xff]
    %v1944 = vld [vmem:[%s10 + $0x70] sm:$0xff]
    %v1945 = vld [vmem:[%s10 + $0x78] sm:$0xff]
    %v1946 = vld [vmem:[#allocation8] sm:$0x1]
    %v1948 = vperm.slane %v1946, 0
    %vm1958 = vcmask 1041409
    %v1959 = vsel %vm1958, %v1923, %v1922
    %vm1960 = vcmask 1042434
    %v1961 = vsel %vm1960, %v1924, %v1959
    %vm1962 = vcmask 1043459
    %v1963 = vsel %vm1962, %v1925, %v1961
    %vm1964 = vcmask 1044484
    %v1965 = vsel %vm1964, %v1926, %v1963
    %vm1966 = vcmask 1045509
    %v1967 = vsel %vm1966, %v1927, %v1965
    %vm1968 = vcmask 1046534
    %v1969 = vsel %vm1968, %v1928, %v1967
    %vm1970 = vcmask 1047559
    %v1971 = vsel %vm1970, %v1929, %v1969
    %1973 = vmatpush.msra.mxu0 %v1945
    %1974 = vmatpush.msra.mxu0 %v1944
    %1975 = vmatpush.msra.mxu0 %v1943
    %1976 = vmatpush.msra.mxu0 %v1942
    %1977 = vmatpush.msra.mxu0 %v1941
    %1978 = vmatpush.msra.mxu0 %v1940
    %1979 = vmatpush.msra.mxu0 %v1939
    %1980 = vmatpush.msra.mxu0 %v1938
    %1981 = vmatpush.msra.mxu0 %v1937
    %1982 = vmatpush.msra.mxu0 %v1936
    %1983 = vmatpush.msra.mxu0 %v1935
    %1984 = vmatpush.msra.mxu0 %v1934
    %1985 = vmatpush.msra.mxu0 %v1933
    %1986 = vmatpush.msra.mxu0 %v1932
    %1987 = vmatpush.msra.mxu0 %v1931
    %1988 = vmatpush.msra.mxu0 %v1930
    %1989 = vmatmul.f32.gmra.mxu0 %v1971
    %v1990 = vpop.f32.mrf.mxu0
    %v1991 = vadd.f32 %v1948, %v1990
    %1992 = vdwg.mxu0
    %1993 = vst [vmem:[#allocation10] sm:$0xff] %v1991
    // Predicated region
    $region66: #{tpu_custom_call.1} parent=1 // pred_check
      _
    $region67: #{tpu_custom_call.1} parent=1 // pred_check_branch
      %1995 = sbr.rel (0) target = $region69
    $region68: #{tpu_custom_call.1} parent=1 // pred_region
      %1997 = vsyncadd [#allocation4], 0
      %s1999 = sshll.u32 [#allocation10], 4
      %s2000 = int_to_ptr.vmem [resolvable:$true] %s1999
      %s2001 = sshll.u32 %s12, 4
      %s2002 = int_to_ptr.hbm [resolvable:$true] %s2001
      %2004 = dma.vmem_to_hbm [thread:$0]  %s2000, 128, %s2002, [#allocation4]
    $region69: #{tpu_custom_call.1} parent=1 // pred_fallthru
      _
    // Predicated region
    $region70: #{tpu_custom_call.1} parent=1 // pred_check
      _
    $region71: #{tpu_custom_call.1} parent=1 // pred_check_branch
      %2006 = sbr.rel (0) target = $region73
    $region72: #{tpu_custom_call.1} parent=1 // pred_region
      %2008 = dma.done [#allocation4], 128
    $region73: #{tpu_custom_call.1} parent=1 // pred_fallthru
      _
    %2009 = vsyncpa [#allocation3], 1
    %2010 = vsyncpa [#allocation6], 1
    %2011 = vsyncpa [#allocation9], 1
    %2012 = vsyncpa [#allocation4], 1

</llo_original>
